<compile_context>
chip_gen: v7x
topology: tpu7x:2x2x1
jax: 0.10.0
libtpu: 0.0.40
codegen_flags: <defaults>
</compile_context>

<pallas_src>
import functools
import math

import jax
import jax.numpy as jnp
from jax import lax
from jax.experimental import pallas as pl
from jax.experimental.pallas import tpu as pltpu


# ----------------------------- Pallas kernel ------------------------------- #

def transformer_block_kernel(seq_ref, mask_ref,
                             bn1a_ref, bn1b_ref, ln1g_ref, ln1b_ref,
                             wqkv_ref, bqkv_ref, wo_ref, bo_ref,
                             bn2a_ref, bn2b_ref,
                             w1_ref, b1_ref, w2_ref, b2_ref,
                             out_ref, *, n_heads, dot_dtype):
    x = seq_ref[...]                     # [L, H]  (batch dim squeezed by BlockSpec)
    mask = mask_ref[...]                 # [1, L]
    L, H = x.shape
    hd = H // n_heads
    inv_scale = jnp.float32(1.0 / math.sqrt(hd))

    # LayerNorm params are used twice (the module reuses lnorm1) -- load once.
    ln_g = ln1g_ref[...]
    ln_b = ln1b_ref[...]

    def layernorm(y, eps=1e-5):
        mu = jnp.mean(y, axis=-1, keepdims=True)
        var = jnp.mean((y - mu) ** 2, axis=-1, keepdims=True)
        return (y - mu) * lax.rsqrt(var + eps) * ln_g + ln_b

    def mm(a, b):                        # MXU matmul in dot_dtype, f32 accumulate
        return jnp.dot(a.astype(dot_dtype), b.astype(dot_dtype),
                       preferred_element_type=jnp.float32)

    def mm_nt(a, b):                     # a @ b.T without materialising a transpose
        return lax.dot_general(a.astype(dot_dtype), b.astype(dot_dtype),
                               (((1,), (1,)), ((), ())),
                               preferred_element_type=jnp.float32)

    skip = x

    # --- permute + BatchNorm1d (eval, folded affine) + permute, then LayerNorm1
    x = x * bn1a_ref[...] + bn1b_ref[...]
    x = layernorm(x)

    # --- Fused QKV projection (Q = K = V = x): one MXU pass, 3x N dimension.
    qkv = mm(x, wqkv_ref[...]) + bqkv_ref[...]           # [L, 3H] f32
    q = qkv[:, :H] * inv_scale                           # fold 1/sqrt(hd) once
    k = qkv[:, H:2 * H]
    v = qkv[:, 2 * H:]

    # Additive key-mask bias, hoisted out of the head loop: 0 keep / -1e10 masked.
    bias = (mask - 1.0) * jnp.float32(1e10)              # [1, L]

    # Accumulate the output projection per head (no lane-axis concatenate);
    # fold the first residual and the output-projection bias in up front.
    wo = wo_ref[...]
    acc = skip + bo_ref[...]                             # [L, H] f32
    for h in range(n_heads):                             # static loop over heads
        sl = slice(h * hd, (h + 1) * hd)
        qh, kh, vh = q[:, sl], k[:, sl], v[:, sl]        # [L, hd] each
        e = mm_nt(qh, kh) + bias                         # [L, L] f32 scores
        e = e - jnp.max(e, axis=-1, keepdims=True)       # row max (XLU)
        p = jnp.exp(e)                                   # EUP
        r = pl.reciprocal(jnp.sum(p, axis=-1, keepdims=True), approx=True)  # EUP
        head = mm(p, vh) * r                             # normalise after PV ([L,hd])
        acc = acc + mm(head, wo[sl, :])                  # attn @ Wo, accumulated
    # attention dropout / outer dropout -> identity (inference); residual already in acc.
    x = acc
    skip = x

    # --- BatchNorm2 (eval, folded) + LayerNorm1 again (as in the original code)
    x = x * bn2a_ref[...] + bn2b_ref[...]
    x = layernorm(x)

    # --- Position-wise feed-forward: fc2(dropout(relu(fc1(x)))) ---
    h1 = jnp.maximum(mm(x, w1_ref[...]) + b1_ref[...], 0.0)
    ff = mm(h1, w2_ref[...]) + b2_ref[...]

    out_ref[...] = skip + ff


# ------------------------------- wrapper ------------------------------------ #

def transformer_block(seq, mask, params, *, n_heads, dot_dtype=jnp.bfloat16):
    """seq: [B, L, H] f32, mask: [B, L] f32 (1=keep, 0=masked)."""
    B, L, H = seq.shape
    eps = 1e-5

    # Fold BatchNorm1d (eval mode) into a per-channel scale/shift.
    def fold_bn(g, b, rm, rv):
        a = g / jnp.sqrt(rv + eps)
        return a.reshape(1, H), (b - rm * a).reshape(1, H)

    bn1a, bn1b = fold_bn(params["bn1_g"], params["bn1_b"],
                         params["bn1_rm"], params["bn1_rv"])
    bn2a, bn2b = fold_bn(params["bn2_g"], params["bn2_b"],
                         params["bn2_rm"], params["bn2_rv"])

    # Fused QKV weight/bias. Matmul weights go to the MXU compute dtype
    # (bf16 by default: ~2x throughput, half the weight HBM/VMEM traffic).
    # Biases / norm parameters stay f32 (added to f32 activations on the VPU).
    wqkv = jnp.concatenate([params["wq"], params["wk"], params["wv"]],
                           axis=1).astype(dot_dtype)                 # [H, 3H]
    bqkv = jnp.concatenate([params["bq"], params["bk"],
                            params["bv"]]).reshape(1, 3 * H)

    r1 = lambda vv: vv.reshape(1, -1)
    param_list = [
        bn1a, bn1b,
        r1(params["ln1_g"]), r1(params["ln1_b"]),
        wqkv, bqkv,
        params["wo"].astype(dot_dtype), r1(params["bo"]),
        bn2a, bn2b,
        params["w1"].astype(dot_dtype), r1(params["b1"]),
        params["w2"].astype(dot_dtype), r1(params["b2"]),
    ]

    mask3 = mask.reshape(B, 1, L).astype(jnp.float32)

    # One batch row per grid step, "parallel" over rows (keeps both v7x
    # TensorCores busy even at small B).  Parameter specs have constant index
    # maps, so each parameter tile is DMA'd exactly once for the whole grid.
    in_specs = [
        pl.BlockSpec((None, L, H), lambda b: (b, 0, 0)),   # seq (batch squeezed)
        pl.BlockSpec((None, 1, L), lambda b: (b, 0, 0)),   # mask
    ] + [pl.BlockSpec(p.shape, lambda b: (0, 0)) for p in param_list]

    out_spec = pl.BlockSpec((None, L, H), lambda b: (b, 0, 0))

    return pl.pallas_call(
        functools.partial(transformer_block_kernel,
                          n_heads=n_heads, dot_dtype=dot_dtype),
        out_shape=jax.ShapeDtypeStruct((B, L, H), jnp.float32),
        grid=(B,),
        in_specs=in_specs,
        out_specs=out_spec,
        compiler_params=pltpu.CompilerParams(
            dimension_semantics=("parallel",),
            vmem_limit_bytes=32 * 1024 * 1024,
        ),
    )(seq, mask3, *param_list)


# --------------------------- pure-JAX reference ------------------------------ #

def reference(seq, mask, P, *, n_heads, dot_dtype=jnp.float32):
    """dot_dtype=f32 -> exact f32 semantics; bf16 -> matmul operands in bf16
    (f32 accumulate), matching the kernel's fast path."""
    eps = 1e-5
    B, L, H = seq.shape
    hd = H // n_heads
    dt = dot_dtype

    def mm(a, b):
        return jnp.dot(a.astype(dt), b.astype(dt),
                       preferred_element_type=jnp.float32)

    def bn(x, g, b, rm, rv):
        return (x - rm) / jnp.sqrt(rv + eps) * g + b

    def ln(x, g, b):
        mu = x.mean(-1, keepdims=True)
        var = ((x - mu) ** 2).mean(-1, keepdims=True)
        return (x - mu) / jnp.sqrt(var + eps) * g + b

    skip = seq
    x = bn(seq, P["bn1_g"], P["bn1_b"], P["bn1_rm"], P["bn1_rv"])
    x = ln(x, P["ln1_g"], P["ln1_b"])

    q = mm(x, P["wq"]) + P["bq"]
    k = mm(x, P["wk"]) + P["bk"]
    v = mm(x, P["wv"]) + P["bv"]
    qh = q.reshape(B, L, n_heads, hd).transpose(0, 2, 1, 3)
    kh = k.reshape(B, L, n_heads, hd).transpose(0, 2, 1, 3)
    vh = v.reshape(B, L, n_heads, hd).transpose(0, 2, 1, 3)
    e = jnp.einsum("bhqd,bhkd->bhqk", qh.astype(dt), kh.astype(dt),
                   preferred_element_type=jnp.float32) / math.sqrt(hd)
    e = jnp.where(mask[:, None, None, :] == 0.0, -1e10, e)
    a = jax.nn.softmax(e, axis=-1)
    o = jnp.einsum("bhqk,bhkd->bhqd", a.astype(dt), vh.astype(dt),
                   preferred_element_type=jnp.float32)
    o = o.transpose(0, 2, 1, 3).reshape(B, L, H)
    o = mm(o, P["wo"]) + P["bo"]

    x = skip + o
    skip = x
    x = bn(x, P["bn2_g"], P["bn2_b"], P["bn2_rm"], P["bn2_rv"])
    x = ln(x, P["ln1_g"], P["ln1_b"])   # original code reuses lnorm1
    h1 = jax.nn.relu(mm(x, P["w1"]) + P["b1"])
    ff = mm(h1, P["w2"]) + P["b2"]
    return skip + ff


# ---------------------------------- main ------------------------------------- #

if __name__ == "__main__":
    B, L, H, NH, PF = 2, 8, 32, 4, 64
    key = jax.random.PRNGKey(0)
    ks = jax.random.split(key, 24)

    def lin(k, fan_in, fan_out):
        return jax.random.normal(k, (fan_in, fan_out), jnp.float32) / math.sqrt(fan_in)

    params = {
        # BatchNorm1d #1 (weight, bias, running_mean, running_var)
        "bn1_g": 1.0 + 0.1 * jax.random.normal(ks[0], (H,), jnp.float32),
        "bn1_b": 0.1 * jax.random.normal(ks[1], (H,), jnp.float32),
        "bn1_rm": 0.1 * jax.random.normal(ks[2], (H,), jnp.float32),
        "bn1_rv": 1.0 + 0.1 * jnp.abs(jax.random.normal(ks[3], (H,), jnp.float32)),
        # LayerNorm #1
        "ln1_g": 1.0 + 0.1 * jax.random.normal(ks[4], (H,), jnp.float32),
        "ln1_b": 0.1 * jax.random.normal(ks[5], (H,), jnp.float32),
        # Multi-head attention linears (stored as [in, out])
        "wq": lin(ks[6], H, H), "bq": 0.1 * jax.random.normal(ks[7], (H,), jnp.float32),
        "wk": lin(ks[8], H, H), "bk": 0.1 * jax.random.normal(ks[9], (H,), jnp.float32),
        "wv": lin(ks[10], H, H), "bv": 0.1 * jax.random.normal(ks[11], (H,), jnp.float32),
        "wo": lin(ks[12], H, H), "bo": 0.1 * jax.random.normal(ks[13], (H,), jnp.float32),
        # BatchNorm1d #2
        "bn2_g": 1.0 + 0.1 * jax.random.normal(ks[14], (H,), jnp.float32),
        "bn2_b": 0.1 * jax.random.normal(ks[15], (H,), jnp.float32),
        "bn2_rm": 0.1 * jax.random.normal(ks[16], (H,), jnp.float32),
        "bn2_rv": 1.0 + 0.1 * jnp.abs(jax.random.normal(ks[17], (H,), jnp.float32)),
        # Position-wise feed-forward
        "w1": lin(ks[18], H, PF), "b1": 0.1 * jax.random.normal(ks[19], (PF,), jnp.float32),
        "w2": lin(ks[20], PF, H), "b2": 0.1 * jax.random.normal(ks[21], (H,), jnp.float32),
    }
    # NOTE: lnorm2 exists in __init__ but is never used in forward -> omitted.

    seq = jax.random.normal(ks[22], (B, L, H), jnp.float32)
    # Padding mask: sequence 0 is full length, sequence 1 has 5 valid positions.
    lens = jnp.array([L, 5])
    mask = (jnp.arange(L)[None, :] < lens[:, None]).astype(jnp.float32)  # [B, L]

    # --- f32 MXU path: must track the exact f32 reference (only the approximate
    #     EUP reciprocal in the softmax normalisation differs).
    out_f32 = transformer_block(seq, mask, params, n_heads=NH, dot_dtype=jnp.float32)
    out_f32 = jax.block_until_ready(out_f32)
    ref_f32 = reference(seq, mask, params, n_heads=NH, dot_dtype=jnp.float32)
    assert out_f32.shape == (B, L, H)
    assert jnp.max(jnp.abs(out_f32 - ref_f32)) < 5e-3, "f32 mismatch vs reference"

    # --- bf16 MXU path (default, fast): compare against a bf16-matmul reference.
    out_bf16 = transformer_block(seq, mask, params, n_heads=NH)  # bf16 default
    out_bf16 = jax.block_until_ready(out_bf16)
    ref_bf16 = reference(seq, mask, params, n_heads=NH, dot_dtype=jnp.bfloat16)
    assert jnp.max(jnp.abs(out_bf16 - ref_bf16)) < 5e-2, "bf16 mismatch vs reference"

    print("KERNEL_OK")
</pallas_src>

<mosaic_0001>
module attributes {stable_mosaic.version = 11 : i64} {
  func.func @transformer_block_kernel(%arg0: i32, %arg1: memref<1x8x32xf32, #tpu.memory_space<vmem>>, %arg2: memref<1x1x8xf32, #tpu.memory_space<vmem>>, %arg3: memref<1x32xf32, #tpu.memory_space<vmem>>, %arg4: memref<1x32xf32, #tpu.memory_space<vmem>>, %arg5: memref<1x32xf32, #tpu.memory_space<vmem>>, %arg6: memref<1x32xf32, #tpu.memory_space<vmem>>, %arg7: memref<32x96xf32, #tpu.memory_space<vmem>>, %arg8: memref<1x96xf32, #tpu.memory_space<vmem>>, %arg9: memref<32x32xf32, #tpu.memory_space<vmem>>, %arg10: memref<1x32xf32, #tpu.memory_space<vmem>>, %arg11: memref<1x32xf32, #tpu.memory_space<vmem>>, %arg12: memref<1x32xf32, #tpu.memory_space<vmem>>, %arg13: memref<32x64xf32, #tpu.memory_space<vmem>>, %arg14: memref<1x64xf32, #tpu.memory_space<vmem>>, %arg15: memref<64x32xf32, #tpu.memory_space<vmem>>, %arg16: memref<1x32xf32, #tpu.memory_space<vmem>>, %arg17: memref<1x8x32xf32, #tpu.memory_space<vmem>>) attributes {dimension_semantics = [#tpu.dimension_semantics<parallel>], iteration_bounds = array<i64: 2>, scalar_prefetch = 0 : i64, scratch_operands = 0 : i64, tpu.core_type = #tpu.core_type<tc>, window_params = [{transform_indices = @transform_0, window_bounds = array<i64: 1, 8, 32>}, {transform_indices = @transform_1, window_bounds = array<i64: 1, 1, 8>}, {pipeline_mode = #tpu.pipeline_mode<synchronous>, transform_indices = @transform_2, window_bounds = array<i64: 1, 32>}, {pipeline_mode = #tpu.pipeline_mode<synchronous>, transform_indices = @transform_3, window_bounds = array<i64: 1, 32>}, {pipeline_mode = #tpu.pipeline_mode<synchronous>, transform_indices = @transform_4, window_bounds = array<i64: 1, 32>}, {pipeline_mode = #tpu.pipeline_mode<synchronous>, transform_indices = @transform_5, window_bounds = array<i64: 1, 32>}, {pipeline_mode = #tpu.pipeline_mode<synchronous>, transform_indices = @transform_6, window_bounds = array<i64: 32, 96>}, {pipeline_mode = #tpu.pipeline_mode<synchronous>, transform_indices = @transform_7, window_bounds = array<i64: 1, 96>}, {pipeline_mode = #tpu.pipeline_mode<synchronous>, transform_indices = @transform_8, window_bounds = array<i64: 32, 32>}, {pipeline_mode = #tpu.pipeline_mode<synchronous>, transform_indices = @transform_9, window_bounds = array<i64: 1, 32>}, {pipeline_mode = #tpu.pipeline_mode<synchronous>, transform_indices = @transform_10, window_bounds = array<i64: 1, 32>}, {pipeline_mode = #tpu.pipeline_mode<synchronous>, transform_indices = @transform_11, window_bounds = array<i64: 1, 32>}, {pipeline_mode = #tpu.pipeline_mode<synchronous>, transform_indices = @transform_12, window_bounds = array<i64: 32, 64>}, {pipeline_mode = #tpu.pipeline_mode<synchronous>, transform_indices = @transform_13, window_bounds = array<i64: 1, 64>}, {pipeline_mode = #tpu.pipeline_mode<synchronous>, transform_indices = @transform_14, window_bounds = array<i64: 64, 32>}, {pipeline_mode = #tpu.pipeline_mode<synchronous>, transform_indices = @transform_15, window_bounds = array<i64: 1, 32>}, {transform_indices = @transform_16, window_bounds = array<i64: 1, 8, 32>}]} {
    %c0 = arith.constant 0 : index
    %c0_0 = arith.constant 0 : index
    %c0_1 = arith.constant 0 : index
    %0 = vector.load %arg1[%c0, %c0_0, %c0_1] : memref<1x8x32xf32, #tpu.memory_space<vmem>>, vector<1x8x32xf32>
    %1 = vector.shape_cast %0 : vector<1x8x32xf32> to vector<8x32xf32>
    %c0_2 = arith.constant 0 : index
    %c0_3 = arith.constant 0 : index
    %c0_4 = arith.constant 0 : index
    %2 = vector.load %arg2[%c0_2, %c0_3, %c0_4] : memref<1x1x8xf32, #tpu.memory_space<vmem>>, vector<1x1x8xf32>
    %3 = vector.shape_cast %2 : vector<1x1x8xf32> to vector<1x8xf32>
    %c0_5 = arith.constant 0 : index
    %c0_6 = arith.constant 0 : index
    %4 = vector.load %arg5[%c0_5, %c0_6] : memref<1x32xf32, #tpu.memory_space<vmem>>, vector<1x32xf32>
    %c0_7 = arith.constant 0 : index
    %c0_8 = arith.constant 0 : index
    %5 = vector.load %arg6[%c0_7, %c0_8] : memref<1x32xf32, #tpu.memory_space<vmem>>, vector<1x32xf32>
    %c0_9 = arith.constant 0 : index
    %c0_10 = arith.constant 0 : index
    %6 = vector.load %arg3[%c0_9, %c0_10] : memref<1x32xf32, #tpu.memory_space<vmem>>, vector<1x32xf32>
    %7 = vector.broadcast %6 : vector<1x32xf32> to vector<8x32xf32>
    %8 = arith.mulf %1, %7 : vector<8x32xf32>
    %c0_11 = arith.constant 0 : index
    %c0_12 = arith.constant 0 : index
    %9 = vector.load %arg4[%c0_11, %c0_12] : memref<1x32xf32, #tpu.memory_space<vmem>>, vector<1x32xf32>
    %10 = vector.broadcast %9 : vector<1x32xf32> to vector<8x32xf32>
    %11 = arith.addf %8, %10 : vector<8x32xf32>
    %cst = arith.constant dense<0.000000e+00> : vector<8xf32>
    %12 = vector.multi_reduction <add>, %11, %cst [1] : vector<8x32xf32> to vector<8xf32>
    %13 = vector.shape_cast %12 : vector<8xf32> to vector<8x1xf32>
    %cst_13 = arith.constant 3.200000e+01 : f32
    %14 = vector.broadcast %cst_13 : f32 to vector<8x1xf32>
    %15 = arith.divf %13, %14 : vector<8x1xf32>
    %16 = vector.broadcast %15 : vector<8x1xf32> to vector<8x32xf32>
    %17 = arith.subf %11, %16 : vector<8x32xf32>
    %18 = arith.mulf %17, %17 : vector<8x32xf32>
    %cst_14 = arith.constant dense<0.000000e+00> : vector<8xf32>
    %19 = vector.multi_reduction <add>, %18, %cst_14 [1] : vector<8x32xf32> to vector<8xf32>
    %20 = vector.shape_cast %19 : vector<8xf32> to vector<8x1xf32>
    %cst_15 = arith.constant 3.200000e+01 : f32
    %21 = vector.broadcast %cst_15 : f32 to vector<8x1xf32>
    %22 = arith.divf %20, %21 : vector<8x1xf32>
    %23 = vector.broadcast %15 : vector<8x1xf32> to vector<8x32xf32>
    %24 = arith.subf %11, %23 : vector<8x32xf32>
    %cst_16 = arith.constant 9.99999974E-6 : f32
    %25 = vector.broadcast %cst_16 : f32 to vector<8x1xf32>
    %26 = arith.addf %22, %25 : vector<8x1xf32>
    %27 = math.rsqrt %26 : vector<8x1xf32>
    %28 = vector.broadcast %27 : vector<8x1xf32> to vector<8x32xf32>
    %29 = arith.mulf %24, %28 : vector<8x32xf32>
    %30 = vector.broadcast %4 : vector<1x32xf32> to vector<8x32xf32>
    %31 = arith.mulf %29, %30 : vector<8x32xf32>
    %32 = vector.broadcast %5 : vector<1x32xf32> to vector<8x32xf32>
    %33 = arith.addf %31, %32 : vector<8x32xf32>
    %c0_17 = arith.constant 0 : index
    %c0_18 = arith.constant 0 : index
    %34 = vector.load %arg7[%c0_17, %c0_18] : memref<32x96xf32, #tpu.memory_space<vmem>>, vector<32x96xf32>
    %cst_19 = arith.constant dense<0.000000e+00> : vector<8x96xf32>
    %35 = tpu.matmul %33, %34, %cst_19 {dimension_numbers = #tpu.dot_dimension_numbers<[1], [0], [0], [1], [0, 0, 1, 1], [], []>} : vector<8x32xf32>, vector<32x96xf32>, vector<8x96xf32> -> vector<8x96xf32>
    %c0_20 = arith.constant 0 : index
    %c0_21 = arith.constant 0 : index
    %36 = vector.load %arg8[%c0_20, %c0_21] : memref<1x96xf32, #tpu.memory_space<vmem>>, vector<1x96xf32>
    %37 = vector.broadcast %36 : vector<1x96xf32> to vector<8x96xf32>
    %38 = arith.addf %35, %37 : vector<8x96xf32>
    %39 = vector.extract_strided_slice %38 {offsets = [0, 0], sizes = [8, 32], strides = [1, 1]} : vector<8x96xf32> to vector<8x32xf32>
    %cst_22 = arith.constant 0.353553385 : f32
    %40 = vector.broadcast %cst_22 : f32 to vector<8x32xf32>
    %41 = arith.mulf %39, %40 : vector<8x32xf32>
    %42 = vector.extract_strided_slice %38 {offsets = [0, 32], sizes = [8, 32], strides = [1, 1]} : vector<8x96xf32> to vector<8x32xf32>
    %43 = vector.extract_strided_slice %38 {offsets = [0, 64], sizes = [8, 32], strides = [1, 1]} : vector<8x96xf32> to vector<8x32xf32>
    %cst_23 = arith.constant 1.000000e+00 : f32
    %44 = vector.broadcast %cst_23 : f32 to vector<1x8xf32>
    %45 = arith.subf %3, %44 : vector<1x8xf32>
    %cst_24 = arith.constant 1.000000e+10 : f32
    %46 = vector.broadcast %cst_24 : f32 to vector<1x8xf32>
    %47 = arith.mulf %45, %46 : vector<1x8xf32>
    %c0_25 = arith.constant 0 : index
    %c0_26 = arith.constant 0 : index
    %48 = vector.load %arg9[%c0_25, %c0_26] : memref<32x32xf32, #tpu.memory_space<vmem>>, vector<32x32xf32>
    %c0_27 = arith.constant 0 : index
    %c0_28 = arith.constant 0 : index
    %49 = vector.load %arg10[%c0_27, %c0_28] : memref<1x32xf32, #tpu.memory_space<vmem>>, vector<1x32xf32>
    %50 = vector.broadcast %49 : vector<1x32xf32> to vector<8x32xf32>
    %51 = arith.addf %1, %50 : vector<8x32xf32>
    %52 = vector.extract_strided_slice %41 {offsets = [0, 0], sizes = [8, 8], strides = [1, 1]} : vector<8x32xf32> to vector<8x8xf32>
    %53 = vector.extract_strided_slice %42 {offsets = [0, 0], sizes = [8, 8], strides = [1, 1]} : vector<8x32xf32> to vector<8x8xf32>
    %54 = vector.extract_strided_slice %43 {offsets = [0, 0], sizes = [8, 8], strides = [1, 1]} : vector<8x32xf32> to vector<8x8xf32>
    %cst_29 = arith.constant dense<0.000000e+00> : vector<8x8xf32>
    %55 = tpu.matmul %52, %53, %cst_29 {dimension_numbers = #tpu.dot_dimension_numbers<[1], [1], [0], [0], [0, 0, 1, 0], [], []>} : vector<8x8xf32>, vector<8x8xf32>, vector<8x8xf32> -> vector<8x8xf32>
    %56 = vector.broadcast %47 : vector<1x8xf32> to vector<8x8xf32>
    %57 = arith.addf %55, %56 : vector<8x8xf32>
    %cst_30 = arith.constant dense<0xFF800000> : vector<8xf32>
    %58 = vector.multi_reduction <maximumf>, %57, %cst_30 [1] : vector<8x8xf32> to vector<8xf32>
    %59 = vector.shape_cast %58 : vector<8xf32> to vector<8x1xf32>
    %60 = vector.broadcast %59 : vector<8x1xf32> to vector<8x8xf32>
    %61 = arith.subf %57, %60 : vector<8x8xf32>
    %62 = math.exp %61 : vector<8x8xf32>
    %cst_31 = arith.constant dense<0.000000e+00> : vector<8xf32>
    %63 = vector.multi_reduction <add>, %62, %cst_31 [1] : vector<8x8xf32> to vector<8xf32>
    %64 = vector.shape_cast %63 : vector<8xf32> to vector<8x1xf32>
    %65 = tpu.reciprocal %64 {approx = true} : vector<8x1xf32> -> vector<8x1xf32>
    %cst_32 = arith.constant dense<0.000000e+00> : vector<8x8xf32>
    %66 = tpu.matmul %62, %54, %cst_32 {dimension_numbers = #tpu.dot_dimension_numbers<[1], [0], [0], [1], [0, 0, 1, 1], [], []>} : vector<8x8xf32>, vector<8x8xf32>, vector<8x8xf32> -> vector<8x8xf32>
    %67 = vector.broadcast %65 : vector<8x1xf32> to vector<8x8xf32>
    %68 = arith.mulf %66, %67 : vector<8x8xf32>
    %69 = vector.extract_strided_slice %48 {offsets = [0, 0], sizes = [8, 32], strides = [1, 1]} : vector<32x32xf32> to vector<8x32xf32>
    %cst_33 = arith.constant dense<0.000000e+00> : vector<8x32xf32>
    %70 = tpu.matmul %68, %69, %cst_33 {dimension_numbers = #tpu.dot_dimension_numbers<[1], [0], [0], [1], [0, 0, 1, 1], [], []>} : vector<8x8xf32>, vector<8x32xf32>, vector<8x32xf32> -> vector<8x32xf32>
    %71 = arith.addf %51, %70 : vector<8x32xf32>
    %72 = vector.extract_strided_slice %41 {offsets = [0, 8], sizes = [8, 8], strides = [1, 1]} : vector<8x32xf32> to vector<8x8xf32>
    %73 = vector.extract_strided_slice %42 {offsets = [0, 8], sizes = [8, 8], strides = [1, 1]} : vector<8x32xf32> to vector<8x8xf32>
    %74 = vector.extract_strided_slice %43 {offsets = [0, 8], sizes = [8, 8], strides = [1, 1]} : vector<8x32xf32> to vector<8x8xf32>
    %cst_34 = arith.constant dense<0.000000e+00> : vector<8x8xf32>
    %75 = tpu.matmul %72, %73, %cst_34 {dimension_numbers = #tpu.dot_dimension_numbers<[1], [1], [0], [0], [0, 0, 1, 0], [], []>} : vector<8x8xf32>, vector<8x8xf32>, vector<8x8xf32> -> vector<8x8xf32>
    %76 = vector.broadcast %47 : vector<1x8xf32> to vector<8x8xf32>
    %77 = arith.addf %75, %76 : vector<8x8xf32>
    %cst_35 = arith.constant dense<0xFF800000> : vector<8xf32>
    %78 = vector.multi_reduction <maximumf>, %77, %cst_35 [1] : vector<8x8xf32> to vector<8xf32>
    %79 = vector.shape_cast %78 : vector<8xf32> to vector<8x1xf32>
    %80 = vector.broadcast %79 : vector<8x1xf32> to vector<8x8xf32>
    %81 = arith.subf %77, %80 : vector<8x8xf32>
    %82 = math.exp %81 : vector<8x8xf32>
    %cst_36 = arith.constant dense<0.000000e+00> : vector<8xf32>
    %83 = vector.multi_reduction <add>, %82, %cst_36 [1] : vector<8x8xf32> to vector<8xf32>
    %84 = vector.shape_cast %83 : vector<8xf32> to vector<8x1xf32>
    %85 = tpu.reciprocal %84 {approx = true} : vector<8x1xf32> -> vector<8x1xf32>
    %cst_37 = arith.constant dense<0.000000e+00> : vector<8x8xf32>
    %86 = tpu.matmul %82, %74, %cst_37 {dimension_numbers = #tpu.dot_dimension_numbers<[1], [0], [0], [1], [0, 0, 1, 1], [], []>} : vector<8x8xf32>, vector<8x8xf32>, vector<8x8xf32> -> vector<8x8xf32>
    %87 = vector.broadcast %85 : vector<8x1xf32> to vector<8x8xf32>
    %88 = arith.mulf %86, %87 : vector<8x8xf32>
    %89 = vector.extract_strided_slice %48 {offsets = [8, 0], sizes = [8, 32], strides = [1, 1]} : vector<32x32xf32> to vector<8x32xf32>
    %cst_38 = arith.constant dense<0.000000e+00> : vector<8x32xf32>
    %90 = tpu.matmul %88, %89, %cst_38 {dimension_numbers = #tpu.dot_dimension_numbers<[1], [0], [0], [1], [0, 0, 1, 1], [], []>} : vector<8x8xf32>, vector<8x32xf32>, vector<8x32xf32> -> vector<8x32xf32>
    %91 = arith.addf %71, %90 : vector<8x32xf32>
    %92 = vector.extract_strided_slice %41 {offsets = [0, 16], sizes = [8, 8], strides = [1, 1]} : vector<8x32xf32> to vector<8x8xf32>
    %93 = vector.extract_strided_slice %42 {offsets = [0, 16], sizes = [8, 8], strides = [1, 1]} : vector<8x32xf32> to vector<8x8xf32>
    %94 = vector.extract_strided_slice %43 {offsets = [0, 16], sizes = [8, 8], strides = [1, 1]} : vector<8x32xf32> to vector<8x8xf32>
    %cst_39 = arith.constant dense<0.000000e+00> : vector<8x8xf32>
    %95 = tpu.matmul %92, %93, %cst_39 {dimension_numbers = #tpu.dot_dimension_numbers<[1], [1], [0], [0], [0, 0, 1, 0], [], []>} : vector<8x8xf32>, vector<8x8xf32>, vector<8x8xf32> -> vector<8x8xf32>
    %96 = vector.broadcast %47 : vector<1x8xf32> to vector<8x8xf32>
    %97 = arith.addf %95, %96 : vector<8x8xf32>
    %cst_40 = arith.constant dense<0xFF800000> : vector<8xf32>
    %98 = vector.multi_reduction <maximumf>, %97, %cst_40 [1] : vector<8x8xf32> to vector<8xf32>
    %99 = vector.shape_cast %98 : vector<8xf32> to vector<8x1xf32>
    %100 = vector.broadcast %99 : vector<8x1xf32> to vector<8x8xf32>
    %101 = arith.subf %97, %100 : vector<8x8xf32>
    %102 = math.exp %101 : vector<8x8xf32>
    %cst_41 = arith.constant dense<0.000000e+00> : vector<8xf32>
    %103 = vector.multi_reduction <add>, %102, %cst_41 [1] : vector<8x8xf32> to vector<8xf32>
    %104 = vector.shape_cast %103 : vector<8xf32> to vector<8x1xf32>
    %105 = tpu.reciprocal %104 {approx = true} : vector<8x1xf32> -> vector<8x1xf32>
    %cst_42 = arith.constant dense<0.000000e+00> : vector<8x8xf32>
    %106 = tpu.matmul %102, %94, %cst_42 {dimension_numbers = #tpu.dot_dimension_numbers<[1], [0], [0], [1], [0, 0, 1, 1], [], []>} : vector<8x8xf32>, vector<8x8xf32>, vector<8x8xf32> -> vector<8x8xf32>
    %107 = vector.broadcast %105 : vector<8x1xf32> to vector<8x8xf32>
    %108 = arith.mulf %106, %107 : vector<8x8xf32>
    %109 = vector.extract_strided_slice %48 {offsets = [16, 0], sizes = [8, 32], strides = [1, 1]} : vector<32x32xf32> to vector<8x32xf32>
    %cst_43 = arith.constant dense<0.000000e+00> : vector<8x32xf32>
    %110 = tpu.matmul %108, %109, %cst_43 {dimension_numbers = #tpu.dot_dimension_numbers<[1], [0], [0], [1], [0, 0, 1, 1], [], []>} : vector<8x8xf32>, vector<8x32xf32>, vector<8x32xf32> -> vector<8x32xf32>
    %111 = arith.addf %91, %110 : vector<8x32xf32>
    %112 = vector.extract_strided_slice %41 {offsets = [0, 24], sizes = [8, 8], strides = [1, 1]} : vector<8x32xf32> to vector<8x8xf32>
    %113 = vector.extract_strided_slice %42 {offsets = [0, 24], sizes = [8, 8], strides = [1, 1]} : vector<8x32xf32> to vector<8x8xf32>
    %114 = vector.extract_strided_slice %43 {offsets = [0, 24], sizes = [8, 8], strides = [1, 1]} : vector<8x32xf32> to vector<8x8xf32>
    %cst_44 = arith.constant dense<0.000000e+00> : vector<8x8xf32>
    %115 = tpu.matmul %112, %113, %cst_44 {dimension_numbers = #tpu.dot_dimension_numbers<[1], [1], [0], [0], [0, 0, 1, 0], [], []>} : vector<8x8xf32>, vector<8x8xf32>, vector<8x8xf32> -> vector<8x8xf32>
    %116 = vector.broadcast %47 : vector<1x8xf32> to vector<8x8xf32>
    %117 = arith.addf %115, %116 : vector<8x8xf32>
    %cst_45 = arith.constant dense<0xFF800000> : vector<8xf32>
    %118 = vector.multi_reduction <maximumf>, %117, %cst_45 [1] : vector<8x8xf32> to vector<8xf32>
    %119 = vector.shape_cast %118 : vector<8xf32> to vector<8x1xf32>
    %120 = vector.broadcast %119 : vector<8x1xf32> to vector<8x8xf32>
    %121 = arith.subf %117, %120 : vector<8x8xf32>
    %122 = math.exp %121 : vector<8x8xf32>
    %cst_46 = arith.constant dense<0.000000e+00> : vector<8xf32>
    %123 = vector.multi_reduction <add>, %122, %cst_46 [1] : vector<8x8xf32> to vector<8xf32>
    %124 = vector.shape_cast %123 : vector<8xf32> to vector<8x1xf32>
    %125 = tpu.reciprocal %124 {approx = true} : vector<8x1xf32> -> vector<8x1xf32>
    %cst_47 = arith.constant dense<0.000000e+00> : vector<8x8xf32>
    %126 = tpu.matmul %122, %114, %cst_47 {dimension_numbers = #tpu.dot_dimension_numbers<[1], [0], [0], [1], [0, 0, 1, 1], [], []>} : vector<8x8xf32>, vector<8x8xf32>, vector<8x8xf32> -> vector<8x8xf32>
    %127 = vector.broadcast %125 : vector<8x1xf32> to vector<8x8xf32>
    %128 = arith.mulf %126, %127 : vector<8x8xf32>
    %129 = vector.extract_strided_slice %48 {offsets = [24, 0], sizes = [8, 32], strides = [1, 1]} : vector<32x32xf32> to vector<8x32xf32>
    %cst_48 = arith.constant dense<0.000000e+00> : vector<8x32xf32>
    %130 = tpu.matmul %128, %129, %cst_48 {dimension_numbers = #tpu.dot_dimension_numbers<[1], [0], [0], [1], [0, 0, 1, 1], [], []>} : vector<8x8xf32>, vector<8x32xf32>, vector<8x32xf32> -> vector<8x32xf32>
    %131 = arith.addf %111, %130 : vector<8x32xf32>
    %c0_49 = arith.constant 0 : index
    %c0_50 = arith.constant 0 : index
    %132 = vector.load %arg11[%c0_49, %c0_50] : memref<1x32xf32, #tpu.memory_space<vmem>>, vector<1x32xf32>
    %133 = vector.broadcast %132 : vector<1x32xf32> to vector<8x32xf32>
    %134 = arith.mulf %131, %133 : vector<8x32xf32>
    %c0_51 = arith.constant 0 : index
    %c0_52 = arith.constant 0 : index
    %135 = vector.load %arg12[%c0_51, %c0_52] : memref<1x32xf32, #tpu.memory_space<vmem>>, vector<1x32xf32>
    %136 = vector.broadcast %135 : vector<1x32xf32> to vector<8x32xf32>
    %137 = arith.addf %134, %136 : vector<8x32xf32>
    %cst_53 = arith.constant dense<0.000000e+00> : vector<8xf32>
    %138 = vector.multi_reduction <add>, %137, %cst_53 [1] : vector<8x32xf32> to vector<8xf32>
    %139 = vector.shape_cast %138 : vector<8xf32> to vector<8x1xf32>
    %cst_54 = arith.constant 3.200000e+01 : f32
    %140 = vector.broadcast %cst_54 : f32 to vector<8x1xf32>
    %141 = arith.divf %139, %140 : vector<8x1xf32>
    %142 = vector.broadcast %141 : vector<8x1xf32> to vector<8x32xf32>
    %143 = arith.subf %137, %142 : vector<8x32xf32>
    %144 = arith.mulf %143, %143 : vector<8x32xf32>
    %cst_55 = arith.constant dense<0.000000e+00> : vector<8xf32>
    %145 = vector.multi_reduction <add>, %144, %cst_55 [1] : vector<8x32xf32> to vector<8xf32>
    %146 = vector.shape_cast %145 : vector<8xf32> to vector<8x1xf32>
    %cst_56 = arith.constant 3.200000e+01 : f32
    %147 = vector.broadcast %cst_56 : f32 to vector<8x1xf32>
    %148 = arith.divf %146, %147 : vector<8x1xf32>
    %149 = vector.broadcast %141 : vector<8x1xf32> to vector<8x32xf32>
    %150 = arith.subf %137, %149 : vector<8x32xf32>
    %cst_57 = arith.constant 9.99999974E-6 : f32
    %151 = vector.broadcast %cst_57 : f32 to vector<8x1xf32>
    %152 = arith.addf %148, %151 : vector<8x1xf32>
    %153 = math.rsqrt %152 : vector<8x1xf32>
    %154 = vector.broadcast %153 : vector<8x1xf32> to vector<8x32xf32>
    %155 = arith.mulf %150, %154 : vector<8x32xf32>
    %156 = vector.broadcast %4 : vector<1x32xf32> to vector<8x32xf32>
    %157 = arith.mulf %155, %156 : vector<8x32xf32>
    %158 = vector.broadcast %5 : vector<1x32xf32> to vector<8x32xf32>
    %159 = arith.addf %157, %158 : vector<8x32xf32>
    %c0_58 = arith.constant 0 : index
    %c0_59 = arith.constant 0 : index
    %160 = vector.load %arg13[%c0_58, %c0_59] : memref<32x64xf32, #tpu.memory_space<vmem>>, vector<32x64xf32>
    %cst_60 = arith.constant dense<0.000000e+00> : vector<8x64xf32>
    %161 = tpu.matmul %159, %160, %cst_60 {dimension_numbers = #tpu.dot_dimension_numbers<[1], [0], [0], [1], [0, 0, 1, 1], [], []>} : vector<8x32xf32>, vector<32x64xf32>, vector<8x64xf32> -> vector<8x64xf32>
    %c0_61 = arith.constant 0 : index
    %c0_62 = arith.constant 0 : index
    %162 = vector.load %arg14[%c0_61, %c0_62] : memref<1x64xf32, #tpu.memory_space<vmem>>, vector<1x64xf32>
    %163 = vector.broadcast %162 : vector<1x64xf32> to vector<8x64xf32>
    %164 = arith.addf %161, %163 : vector<8x64xf32>
    %cst_63 = arith.constant 0.000000e+00 : f32
    %165 = vector.broadcast %cst_63 : f32 to vector<8x64xf32>
    %166 = arith.maximumf %164, %165 : vector<8x64xf32>
    %c0_64 = arith.constant 0 : index
    %c0_65 = arith.constant 0 : index
    %167 = vector.load %arg15[%c0_64, %c0_65] : memref<64x32xf32, #tpu.memory_space<vmem>>, vector<64x32xf32>
    %cst_66 = arith.constant dense<0.000000e+00> : vector<8x32xf32>
    %168 = tpu.matmul %166, %167, %cst_66 {dimension_numbers = #tpu.dot_dimension_numbers<[1], [0], [0], [1], [0, 0, 1, 1], [], []>} : vector<8x64xf32>, vector<64x32xf32>, vector<8x32xf32> -> vector<8x32xf32>
    %c0_67 = arith.constant 0 : index
    %c0_68 = arith.constant 0 : index
    %169 = vector.load %arg16[%c0_67, %c0_68] : memref<1x32xf32, #tpu.memory_space<vmem>>, vector<1x32xf32>
    %170 = vector.broadcast %169 : vector<1x32xf32> to vector<8x32xf32>
    %171 = arith.addf %168, %170 : vector<8x32xf32>
    %172 = arith.addf %131, %171 : vector<8x32xf32>
    %c0_69 = arith.constant 0 : index
    %c0_70 = arith.constant 0 : index
    %c0_71 = arith.constant 0 : index
    %173 = vector.load %arg17[%c0_69, %c0_70, %c0_71] : memref<1x8x32xf32, #tpu.memory_space<vmem>>, vector<1x8x32xf32>
    %174 = vector.shape_cast %173 : vector<1x8x32xf32> to vector<8x32xf32>
    %175 = vector.shape_cast %172 : vector<8x32xf32> to vector<1x8x32xf32>
    tpu.vector_store %arg17[%c0_69, %c0_70, %c0_71], %175 {strides = array<i32>} : memref<1x8x32xf32, #tpu.memory_space<vmem>>, vector<1x8x32xf32>,
    return
  }
  func.func @transform_0(%arg0: i32) -> (i32, i32, i32) {
    %c0_i32 = arith.constant 0 : i32
    %c0_i32_0 = arith.constant 0 : i32
    %c0_i32_1 = arith.constant 0 : i32
    return %arg0, %c0_i32, %c0_i32_0 : i32, i32, i32
  }
  func.func @transform_1(%arg0: i32) -> (i32, i32, i32) {
    %c0_i32 = arith.constant 0 : i32
    %c0_i32_0 = arith.constant 0 : i32
    %c0_i32_1 = arith.constant 0 : i32
    return %arg0, %c0_i32, %c0_i32_0 : i32, i32, i32
  }
  func.func @transform_2(%arg0: i32) -> (i32, i32) {
    %c0_i32 = arith.constant 0 : i32
    %c0_i32_0 = arith.constant 0 : i32
    %c0_i32_1 = arith.constant 0 : i32
    return %c0_i32, %c0_i32_0 : i32, i32
  }
  func.func @transform_3(%arg0: i32) -> (i32, i32) {
    %c0_i32 = arith.constant 0 : i32
    %c0_i32_0 = arith.constant 0 : i32
    %c0_i32_1 = arith.constant 0 : i32
    return %c0_i32, %c0_i32_0 : i32, i32
  }
  func.func @transform_4(%arg0: i32) -> (i32, i32) {
    %c0_i32 = arith.constant 0 : i32
    %c0_i32_0 = arith.constant 0 : i32
    %c0_i32_1 = arith.constant 0 : i32
    return %c0_i32, %c0_i32_0 : i32, i32
  }
  func.func @transform_5(%arg0: i32) -> (i32, i32) {
    %c0_i32 = arith.constant 0 : i32
    %c0_i32_0 = arith.constant 0 : i32
    %c0_i32_1 = arith.constant 0 : i32
    return %c0_i32, %c0_i32_0 : i32, i32
  }
  func.func @transform_6(%arg0: i32) -> (i32, i32) {
    %c0_i32 = arith.constant 0 : i32
    %c0_i32_0 = arith.constant 0 : i32
    %c0_i32_1 = arith.constant 0 : i32
    return %c0_i32, %c0_i32_0 : i32, i32
  }
  func.func @transform_7(%arg0: i32) -> (i32, i32) {
    %c0_i32 = arith.constant 0 : i32
    %c0_i32_0 = arith.constant 0 : i32
    %c0_i32_1 = arith.constant 0 : i32
    return %c0_i32, %c0_i32_0 : i32, i32
  }
  func.func @transform_8(%arg0: i32) -> (i32, i32) {
    %c0_i32 = arith.constant 0 : i32
    %c0_i32_0 = arith.constant 0 : i32
    %c0_i32_1 = arith.constant 0 : i32
    return %c0_i32, %c0_i32_0 : i32, i32
  }
  func.func @transform_9(%arg0: i32) -> (i32, i32) {
    %c0_i32 = arith.constant 0 : i32
    %c0_i32_0 = arith.constant 0 : i32
    %c0_i32_1 = arith.constant 0 : i32
    return %c0_i32, %c0_i32_0 : i32, i32
  }
  func.func @transform_10(%arg0: i32) -> (i32, i32) {
    %c0_i32 = arith.constant 0 : i32
    %c0_i32_0 = arith.constant 0 : i32
    %c0_i32_1 = arith.constant 0 : i32
    return %c0_i32, %c0_i32_0 : i32, i32
  }
  func.func @transform_11(%arg0: i32) -> (i32, i32) {
    %c0_i32 = arith.constant 0 : i32
    %c0_i32_0 = arith.constant 0 : i32
    %c0_i32_1 = arith.constant 0 : i32
    return %c0_i32, %c0_i32_0 : i32, i32
  }
  func.func @transform_12(%arg0: i32) -> (i32, i32) {
    %c0_i32 = arith.constant 0 : i32
    %c0_i32_0 = arith.constant 0 : i32
    %c0_i32_1 = arith.constant 0 : i32
    return %c0_i32, %c0_i32_0 : i32, i32
  }
  func.func @transform_13(%arg0: i32) -> (i32, i32) {
    %c0_i32 = arith.constant 0 : i32
    %c0_i32_0 = arith.constant 0 : i32
    %c0_i32_1 = arith.constant 0 : i32
    return %c0_i32, %c0_i32_0 : i32, i32
  }
  func.func @transform_14(%arg0: i32) -> (i32, i32) {
    %c0_i32 = arith.constant 0 : i32
    %c0_i32_0 = arith.constant 0 : i32
    %c0_i32_1 = arith.constant 0 : i32
    return %c0_i32, %c0_i32_0 : i32, i32
  }
  func.func @transform_15(%arg0: i32) -> (i32, i32) {
    %c0_i32 = arith.constant 0 : i32
    %c0_i32_0 = arith.constant 0 : i32
    %c0_i32_1 = arith.constant 0 : i32
    return %c0_i32, %c0_i32_0 : i32, i32
  }
  func.func @transform_16(%arg0: i32) -> (i32, i32, i32) {
    %c0_i32 = arith.constant 0 : i32
    %c0_i32_0 = arith.constant 0 : i32
    %c0_i32_1 = arith.constant 0 : i32
    return %arg0, %c0_i32, %c0_i32_0 : i32, i32, i32
  }
}

</mosaic_0001>

<llo_original>
// kernel: tpu_custom_call.1
$region0: #{tpu_custom_call.1}
  #allocation0 [shape = 'u32[]', space=smem, size = 0x4, offset = 0x4, fixed_abs, tag = 'smem constant byte address 0x4 - core index']
  #allocation1 [shape = 'u32[144,128]{1,0:T(1,128)}', space=vmem, size = 0x12000, scoped, tag = 'internal scratch']
  %s0 = inlined_call_operand.hbm [shape: f32[2,8,32], index: 0, kind: input, shape index: {}]
  %s1 = inlined_call_operand.vmem [shape: f32[2,1,8], index: 1, kind: input, shape index: {}]
  %s2 = inlined_call_operand.vmem [shape: f32[1,32], index: 2, kind: input, shape index: {}]
  %s3 = inlined_call_operand.vmem [shape: f32[1,32], index: 3, kind: input, shape index: {}]
  %s4 = inlined_call_operand.vmem [shape: f32[1,32], index: 4, kind: input, shape index: {}]
  %s5 = inlined_call_operand.vmem [shape: f32[1,32], index: 5, kind: input, shape index: {}]
  %s6 = inlined_call_operand.vmem [shape: f32[32,96], index: 6, kind: input, shape index: {}]
  %s7 = inlined_call_operand.vmem [shape: f32[1,96], index: 7, kind: input, shape index: {}]
  %s8 = inlined_call_operand.vmem [shape: f32[32,32], index: 8, kind: input, shape index: {}]
  %s9 = inlined_call_operand.vmem [shape: f32[1,32], index: 9, kind: input, shape index: {}]
  %s10 = inlined_call_operand.vmem [shape: f32[1,32], index: 10, kind: input, shape index: {}]
  %s11 = inlined_call_operand.vmem [shape: f32[1,32], index: 11, kind: input, shape index: {}]
  %s12 = inlined_call_operand.vmem [shape: f32[32,64], index: 12, kind: input, shape index: {}]
  %s13 = inlined_call_operand.vmem [shape: f32[1,64], index: 13, kind: input, shape index: {}]
  %s14 = inlined_call_operand.vmem [shape: f32[64,32], index: 14, kind: input, shape index: {}]
  %s15 = inlined_call_operand.vmem [shape: f32[1,32], index: 15, kind: input, shape index: {}]
  %s16 = inlined_call_operand.hbm [shape: f32[2,8,32], index: 16, kind: output, shape index: {}]
  %s17 = sld [smem:[#allocation0]]
  $region101: #{tpu_custom_call.1} parent=0
    _
  %s19 = ssub.s32 1, %s17
  %s20 = scalar_select 0, %s19, %s17
  $region1: #{tpu_custom_call.1} parent=0
    #allocation2 [shape = 'u8[8192]{0}', space=vmem, size = 0x2000, scoped, tag = 'input window, operand 0']
    #allocation3 [shape = 's32[2]{0}', space=sflag, size = 0x8, scoped, tag = 'scoped memory for tpu_custom_call.1']
    #allocation4 [shape = 's32[2]{0}', space=sflag, size = 0x8, scoped, tag = 'scoped memory for tpu_custom_call.1']
    #allocation5 [shape = 'u8[8192]{0}', space=vmem, size = 0x2000, scoped, tag = 'output window, operand 0']
    %21 = vsyncpa [#allocation3], 0
    %s22 = scalar_lea.sflag [#allocation3], 1
    %23 = vsyncpa %s22, 0
    %24 = vsyncpa [#allocation4], 0
    %s25 = scalar_lea.sflag [#allocation4], 1
    %26 = vsyncpa %s25, 0
    loop: start=0, step=1, limit=4
    $region2: #{tpu_custom_call.1} parent=1 // loop_pre_header
      _
    $region3: #{tpu_custom_call.1} parent=1 // loop_header
      %s28 = sphi 0, %s32
      %p29 = scmp.ge.s32.totalorder %s28, 4
      %s38 = sphi 0, %s40
      %s41 = sphi 0, %s38
      %s42 = sphi 0, %s41
      %s58 = sphi 0, %s42
      %s64 = sphi 0, %s66
      %s67 = sphi 0, %s64
      %s68 = sphi 0, %s67
      %s84 = sphi 0, %s68
      %s88 = sphi 0, %s88
      %s90 = sphi 0, %s88
      %s91 = sphi 0, %s90
      %s105 = sphi 0, %s91
      %s109 = sphi 0, %s109
      %s111 = sphi 0, %s109
      %s112 = sphi 0, %s111
      %s126 = sphi 0, %s112
      %s130 = sphi 0, %s130
      %s132 = sphi 0, %s130
      %s133 = sphi 0, %s132
      %s147 = sphi 0, %s133
      %s151 = sphi 0, %s151
      %s153 = sphi 0, %s151
      %s154 = sphi 0, %s153
      %s168 = sphi 0, %s154
      %s172 = sphi 0, %s172
      %s174 = sphi 0, %s172
      %s175 = sphi 0, %s174
      %s189 = sphi 0, %s175
      %s193 = sphi 0, %s193
      %s195 = sphi 0, %s193
      %s196 = sphi 0, %s195
      %s210 = sphi 0, %s196
      %s214 = sphi 0, %s214
      %s216 = sphi 0, %s214
      %s217 = sphi 0, %s216
      %s231 = sphi 0, %s217
      %s235 = sphi 0, %s235
      %s237 = sphi 0, %s235
      %s238 = sphi 0, %s237
      %s252 = sphi 0, %s238
      %s256 = sphi 0, %s256
      %s258 = sphi 0, %s256
      %s259 = sphi 0, %s258
      %s273 = sphi 0, %s259
      %s277 = sphi 0, %s277
      %s279 = sphi 0, %s277
      %s280 = sphi 0, %s279
      %s294 = sphi 0, %s280
      %s298 = sphi 0, %s298
      %s300 = sphi 0, %s298
      %s301 = sphi 0, %s300
      %s315 = sphi 0, %s301
      %s319 = sphi 0, %s319
      %s321 = sphi 0, %s319
      %s322 = sphi 0, %s321
      %s336 = sphi 0, %s322
      %s340 = sphi 0, %s340
      %s342 = sphi 0, %s340
      %s343 = sphi 0, %s342
      %s357 = sphi 0, %s343
      %s361 = sphi 0, %s361
      %s363 = sphi 0, %s361
      %s364 = sphi 0, %s363
      %s378 = sphi 0, %s364
      %s384 = sphi 0, %s386
      %s387 = sphi 0, %s384
      %s388 = sphi 0, %s387
      %s404 = sphi 0, %s388
    $region4: #{tpu_custom_call.1} parent=1 // loop_header_branch
      %31 = sbr.rel (%p29) target = $region8
    $region5: #{tpu_custom_call.1} parent=1 // loop_body
      %s33 = ssub.s32 %s28, 1
      %s34 = ssub.s32 %s28, 2
      %s35 = sadd.s32 %s28, 1
      %s36 = ssub.s32 %s28, %s35
      %p37 = scmp.eq.s32.totalorder %s36, 0
      %s39 = sadd.s32 %s38, 1
      %s40 = scalar_select %p37, %s38, %s39
      %p43 = pneg %p37
      %p44 = scmp.eq.s32.totalorder %s28, 1
      %p45 = por %p43, %p44
      %p46 = scmp.ne.s32.totalorder %s38, %s41
      %p47 = scmp.eq.s32.totalorder %s28, 0
      %p48 = por %p46, %p47
      %p49 = scmp.ne.s32.totalorder %s38, %s41
      %p50 = scmp.eq.s32.totalorder %s33, 1
      %p51 = por %p49, %p50
      %p52 = scmp.ne.s32.totalorder %s41, %s42
      %p53 = scmp.eq.s32.totalorder %s33, 0
      %p54 = por %p52, %p53
      %p55 = scmp.ne.s32.totalorder %s41, %s42
      %p56 = scmp.eq.s32.totalorder %s34, 1
      %p57 = por %p55, %p56
      %p59 = scmp.ne.s32.totalorder %s42, %s58
      %p60 = scmp.eq.s32.totalorder %s34, 0
      %p61 = por %p59, %p60
      %s62 = ssub.s32 %s28, %s35
      %p63 = scmp.eq.s32.totalorder %s62, 0
      %s65 = sadd.s32 %s64, 1
      %s66 = scalar_select %p63, %s64, %s65
      %p69 = pneg %p63
      %p70 = scmp.eq.s32.totalorder %s28, 1
      %p71 = por %p69, %p70
      %p72 = scmp.ne.s32.totalorder %s64, %s67
      %p73 = scmp.eq.s32.totalorder %s28, 0
      %p74 = por %p72, %p73
      %p75 = scmp.ne.s32.totalorder %s64, %s67
      %p76 = scmp.eq.s32.totalorder %s33, 1
      %p77 = por %p75, %p76
      %p78 = scmp.ne.s32.totalorder %s67, %s68
      %p79 = scmp.eq.s32.totalorder %s33, 0
      %p80 = por %p78, %p79
      %p81 = scmp.ne.s32.totalorder %s67, %s68
      %p82 = scmp.eq.s32.totalorder %s34, 1
      %p83 = por %p81, %p82
      %p85 = scmp.ne.s32.totalorder %s68, %s84
      %p86 = scmp.eq.s32.totalorder %s34, 0
      %p87 = por %p85, %p86
      %s89 = sadd.s32 %s88, 1
      %p92 = scmp.eq.s32.totalorder %s28, 1
      %p93 = scmp.ne.s32.totalorder %s88, %s90
      %p94 = scmp.eq.s32.totalorder %s28, 0
      %p95 = por %p93, %p94
      %p96 = scmp.ne.s32.totalorder %s88, %s90
      %p97 = scmp.eq.s32.totalorder %s33, 1
      %p98 = por %p96, %p97
      %p99 = scmp.ne.s32.totalorder %s90, %s91
      %p100 = scmp.eq.s32.totalorder %s33, 0
      %p101 = por %p99, %p100
      %p102 = scmp.ne.s32.totalorder %s90, %s91
      %p103 = scmp.eq.s32.totalorder %s34, 1
      %p104 = por %p102, %p103
      %p106 = scmp.ne.s32.totalorder %s91, %s105
      %p107 = scmp.eq.s32.totalorder %s34, 0
      %p108 = por %p106, %p107
      %s110 = sadd.s32 %s109, 1
      %p113 = scmp.eq.s32.totalorder %s28, 1
      %p114 = scmp.ne.s32.totalorder %s109, %s111
      %p115 = scmp.eq.s32.totalorder %s28, 0
      %p116 = por %p114, %p115
      %p117 = scmp.ne.s32.totalorder %s109, %s111
      %p118 = scmp.eq.s32.totalorder %s33, 1
      %p119 = por %p117, %p118
      %p120 = scmp.ne.s32.totalorder %s111, %s112
      %p121 = scmp.eq.s32.totalorder %s33, 0
      %p122 = por %p120, %p121
      %p123 = scmp.ne.s32.totalorder %s111, %s112
      %p124 = scmp.eq.s32.totalorder %s34, 1
      %p125 = por %p123, %p124
      %p127 = scmp.ne.s32.totalorder %s112, %s126
      %p128 = scmp.eq.s32.totalorder %s34, 0
      %p129 = por %p127, %p128
      %s131 = sadd.s32 %s130, 1
      %p134 = scmp.eq.s32.totalorder %s28, 1
      %p135 = scmp.ne.s32.totalorder %s130, %s132
      %p136 = scmp.eq.s32.totalorder %s28, 0
      %p137 = por %p135, %p136
      %p138 = scmp.ne.s32.totalorder %s130, %s132
      %p139 = scmp.eq.s32.totalorder %s33, 1
      %p140 = por %p138, %p139
      %p141 = scmp.ne.s32.totalorder %s132, %s133
      %p142 = scmp.eq.s32.totalorder %s33, 0
      %p143 = por %p141, %p142
      %p144 = scmp.ne.s32.totalorder %s132, %s133
      %p145 = scmp.eq.s32.totalorder %s34, 1
      %p146 = por %p144, %p145
      %p148 = scmp.ne.s32.totalorder %s133, %s147
      %p149 = scmp.eq.s32.totalorder %s34, 0
      %p150 = por %p148, %p149
      %s152 = sadd.s32 %s151, 1
      %p155 = scmp.eq.s32.totalorder %s28, 1
      %p156 = scmp.ne.s32.totalorder %s151, %s153
      %p157 = scmp.eq.s32.totalorder %s28, 0
      %p158 = por %p156, %p157
      %p159 = scmp.ne.s32.totalorder %s151, %s153
      %p160 = scmp.eq.s32.totalorder %s33, 1
      %p161 = por %p159, %p160
      %p162 = scmp.ne.s32.totalorder %s153, %s154
      %p163 = scmp.eq.s32.totalorder %s33, 0
      %p164 = por %p162, %p163
      %p165 = scmp.ne.s32.totalorder %s153, %s154
      %p166 = scmp.eq.s32.totalorder %s34, 1
      %p167 = por %p165, %p166
      %p169 = scmp.ne.s32.totalorder %s154, %s168
      %p170 = scmp.eq.s32.totalorder %s34, 0
      %p171 = por %p169, %p170
      %s173 = sadd.s32 %s172, 1
      %p176 = scmp.eq.s32.totalorder %s28, 1
      %p177 = scmp.ne.s32.totalorder %s172, %s174
      %p178 = scmp.eq.s32.totalorder %s28, 0
      %p179 = por %p177, %p178
      %p180 = scmp.ne.s32.totalorder %s172, %s174
      %p181 = scmp.eq.s32.totalorder %s33, 1
      %p182 = por %p180, %p181
      %p183 = scmp.ne.s32.totalorder %s174, %s175
      %p184 = scmp.eq.s32.totalorder %s33, 0
      %p185 = por %p183, %p184
      %p186 = scmp.ne.s32.totalorder %s174, %s175
      %p187 = scmp.eq.s32.totalorder %s34, 1
      %p188 = por %p186, %p187
      %p190 = scmp.ne.s32.totalorder %s175, %s189
      %p191 = scmp.eq.s32.totalorder %s34, 0
      %p192 = por %p190, %p191
      %s194 = sadd.s32 %s193, 1
      %p197 = scmp.eq.s32.totalorder %s28, 1
      %p198 = scmp.ne.s32.totalorder %s193, %s195
      %p199 = scmp.eq.s32.totalorder %s28, 0
      %p200 = por %p198, %p199
      %p201 = scmp.ne.s32.totalorder %s193, %s195
      %p202 = scmp.eq.s32.totalorder %s33, 1
      %p203 = por %p201, %p202
      %p204 = scmp.ne.s32.totalorder %s195, %s196
      %p205 = scmp.eq.s32.totalorder %s33, 0
      %p206 = por %p204, %p205
      %p207 = scmp.ne.s32.totalorder %s195, %s196
      %p208 = scmp.eq.s32.totalorder %s34, 1
      %p209 = por %p207, %p208
      %p211 = scmp.ne.s32.totalorder %s196, %s210
      %p212 = scmp.eq.s32.totalorder %s34, 0
      %p213 = por %p211, %p212
      %s215 = sadd.s32 %s214, 1
      %p218 = scmp.eq.s32.totalorder %s28, 1
      %p219 = scmp.ne.s32.totalorder %s214, %s216
      %p220 = scmp.eq.s32.totalorder %s28, 0
      %p221 = por %p219, %p220
      %p222 = scmp.ne.s32.totalorder %s214, %s216
      %p223 = scmp.eq.s32.totalorder %s33, 1
      %p224 = por %p222, %p223
      %p225 = scmp.ne.s32.totalorder %s216, %s217
      %p226 = scmp.eq.s32.totalorder %s33, 0
      %p227 = por %p225, %p226
      %p228 = scmp.ne.s32.totalorder %s216, %s217
      %p229 = scmp.eq.s32.totalorder %s34, 1
      %p230 = por %p228, %p229
      %p232 = scmp.ne.s32.totalorder %s217, %s231
      %p233 = scmp.eq.s32.totalorder %s34, 0
      %p234 = por %p232, %p233
      %s236 = sadd.s32 %s235, 1
      %p239 = scmp.eq.s32.totalorder %s28, 1
      %p240 = scmp.ne.s32.totalorder %s235, %s237
      %p241 = scmp.eq.s32.totalorder %s28, 0
      %p242 = por %p240, %p241
      %p243 = scmp.ne.s32.totalorder %s235, %s237
      %p244 = scmp.eq.s32.totalorder %s33, 1
      %p245 = por %p243, %p244
      %p246 = scmp.ne.s32.totalorder %s237, %s238
      %p247 = scmp.eq.s32.totalorder %s33, 0
      %p248 = por %p246, %p247
      %p249 = scmp.ne.s32.totalorder %s237, %s238
      %p250 = scmp.eq.s32.totalorder %s34, 1
      %p251 = por %p249, %p250
      %p253 = scmp.ne.s32.totalorder %s238, %s252
      %p254 = scmp.eq.s32.totalorder %s34, 0
      %p255 = por %p253, %p254
      %s257 = sadd.s32 %s256, 1
      %p260 = scmp.eq.s32.totalorder %s28, 1
      %p261 = scmp.ne.s32.totalorder %s256, %s258
      %p262 = scmp.eq.s32.totalorder %s28, 0
      %p263 = por %p261, %p262
      %p264 = scmp.ne.s32.totalorder %s256, %s258
      %p265 = scmp.eq.s32.totalorder %s33, 1
      %p266 = por %p264, %p265
      %p267 = scmp.ne.s32.totalorder %s258, %s259
      %p268 = scmp.eq.s32.totalorder %s33, 0
      %p269 = por %p267, %p268
      %p270 = scmp.ne.s32.totalorder %s258, %s259
      %p271 = scmp.eq.s32.totalorder %s34, 1
      %p272 = por %p270, %p271
      %p274 = scmp.ne.s32.totalorder %s259, %s273
      %p275 = scmp.eq.s32.totalorder %s34, 0
      %p276 = por %p274, %p275
      %s278 = sadd.s32 %s277, 1
      %p281 = scmp.eq.s32.totalorder %s28, 1
      %p282 = scmp.ne.s32.totalorder %s277, %s279
      %p283 = scmp.eq.s32.totalorder %s28, 0
      %p284 = por %p282, %p283
      %p285 = scmp.ne.s32.totalorder %s277, %s279
      %p286 = scmp.eq.s32.totalorder %s33, 1
      %p287 = por %p285, %p286
      %p288 = scmp.ne.s32.totalorder %s279, %s280
      %p289 = scmp.eq.s32.totalorder %s33, 0
      %p290 = por %p288, %p289
      %p291 = scmp.ne.s32.totalorder %s279, %s280
      %p292 = scmp.eq.s32.totalorder %s34, 1
      %p293 = por %p291, %p292
      %p295 = scmp.ne.s32.totalorder %s280, %s294
      %p296 = scmp.eq.s32.totalorder %s34, 0
      %p297 = por %p295, %p296
      %s299 = sadd.s32 %s298, 1
      %p302 = scmp.eq.s32.totalorder %s28, 1
      %p303 = scmp.ne.s32.totalorder %s298, %s300
      %p304 = scmp.eq.s32.totalorder %s28, 0
      %p305 = por %p303, %p304
      %p306 = scmp.ne.s32.totalorder %s298, %s300
      %p307 = scmp.eq.s32.totalorder %s33, 1
      %p308 = por %p306, %p307
      %p309 = scmp.ne.s32.totalorder %s300, %s301
      %p310 = scmp.eq.s32.totalorder %s33, 0
      %p311 = por %p309, %p310
      %p312 = scmp.ne.s32.totalorder %s300, %s301
      %p313 = scmp.eq.s32.totalorder %s34, 1
      %p314 = por %p312, %p313
      %p316 = scmp.ne.s32.totalorder %s301, %s315
      %p317 = scmp.eq.s32.totalorder %s34, 0
      %p318 = por %p316, %p317
      %s320 = sadd.s32 %s319, 1
      %p323 = scmp.eq.s32.totalorder %s28, 1
      %p324 = scmp.ne.s32.totalorder %s319, %s321
      %p325 = scmp.eq.s32.totalorder %s28, 0
      %p326 = por %p324, %p325
      %p327 = scmp.ne.s32.totalorder %s319, %s321
      %p328 = scmp.eq.s32.totalorder %s33, 1
      %p329 = por %p327, %p328
      %p330 = scmp.ne.s32.totalorder %s321, %s322
      %p331 = scmp.eq.s32.totalorder %s33, 0
      %p332 = por %p330, %p331
      %p333 = scmp.ne.s32.totalorder %s321, %s322
      %p334 = scmp.eq.s32.totalorder %s34, 1
      %p335 = por %p333, %p334
      %p337 = scmp.ne.s32.totalorder %s322, %s336
      %p338 = scmp.eq.s32.totalorder %s34, 0
      %p339 = por %p337, %p338
      %s341 = sadd.s32 %s340, 1
      %p344 = scmp.eq.s32.totalorder %s28, 1
      %p345 = scmp.ne.s32.totalorder %s340, %s342
      %p346 = scmp.eq.s32.totalorder %s28, 0
      %p347 = por %p345, %p346
      %p348 = scmp.ne.s32.totalorder %s340, %s342
      %p349 = scmp.eq.s32.totalorder %s33, 1
      %p350 = por %p348, %p349
      %p351 = scmp.ne.s32.totalorder %s342, %s343
      %p352 = scmp.eq.s32.totalorder %s33, 0
      %p353 = por %p351, %p352
      %p354 = scmp.ne.s32.totalorder %s342, %s343
      %p355 = scmp.eq.s32.totalorder %s34, 1
      %p356 = por %p354, %p355
      %p358 = scmp.ne.s32.totalorder %s343, %s357
      %p359 = scmp.eq.s32.totalorder %s34, 0
      %p360 = por %p358, %p359
      %s362 = sadd.s32 %s361, 1
      %p365 = scmp.eq.s32.totalorder %s28, 1
      %p366 = scmp.ne.s32.totalorder %s361, %s363
      %p367 = scmp.eq.s32.totalorder %s28, 0
      %p368 = por %p366, %p367
      %p369 = scmp.ne.s32.totalorder %s361, %s363
      %p370 = scmp.eq.s32.totalorder %s33, 1
      %p371 = por %p369, %p370
      %p372 = scmp.ne.s32.totalorder %s363, %s364
      %p373 = scmp.eq.s32.totalorder %s33, 0
      %p374 = por %p372, %p373
      %p375 = scmp.ne.s32.totalorder %s363, %s364
      %p376 = scmp.eq.s32.totalorder %s34, 1
      %p377 = por %p375, %p376
      %p379 = scmp.ne.s32.totalorder %s364, %s378
      %p380 = scmp.eq.s32.totalorder %s34, 0
      %p381 = por %p379, %p380
      %s382 = ssub.s32 %s28, %s35
      %p383 = scmp.eq.s32.totalorder %s382, 0
      %s385 = sadd.s32 %s384, 1
      %s386 = scalar_select %p383, %s384, %s385
      %p389 = pneg %p383
      %p390 = scmp.eq.s32.totalorder %s28, 1
      %p391 = por %p389, %p390
      %p392 = scmp.ne.s32.totalorder %s384, %s387
      %p393 = scmp.eq.s32.totalorder %s28, 0
      %p394 = por %p392, %p393
      %p395 = scmp.ne.s32.totalorder %s384, %s387
      %p396 = scmp.eq.s32.totalorder %s33, 1
      %p397 = por %p395, %p396
      %p398 = scmp.ne.s32.totalorder %s387, %s388
      %p399 = scmp.eq.s32.totalorder %s33, 0
      %p400 = por %p398, %p399
      %p401 = scmp.ne.s32.totalorder %s387, %s388
      %p402 = scmp.eq.s32.totalorder %s34, 1
      %p403 = por %p401, %p402
      %p405 = scmp.ne.s32.totalorder %s388, %s404
      %p406 = scmp.eq.s32.totalorder %s34, 0
      %p407 = por %p405, %p406
      %p408 = scmp.le.s32.totalorder 1, %s28
      %p409 = scmp.lt.s32.totalorder %s28, 3
      %p410 = pnand %p408, %p409
      %p411 = pneg %p410
      // Predicated region
      $region9: #{tpu_custom_call.1} parent=5 // pred_check
        _
      $region10: #{tpu_custom_call.1} parent=5 // pred_check_branch
        %413 = sbr.rel (%p410) target = $region12
      $region11: #{tpu_custom_call.1} parent=5 // pred_region
        %s414 = ssub.s32 %s28, 1
        // Predicated region
        $region13: #{tpu_custom_call.1} parent=11 // pred_check
          %p415 = pneg %p101
        $region14: #{tpu_custom_call.1} parent=11 // pred_check_branch
          %417 = sbr.rel (%p415) target = $region16
        $region15: #{tpu_custom_call.1} parent=11 // pred_region
          _
        $region16: #{tpu_custom_call.1} parent=11 // pred_fallthru
          _
        // Predicated region
        $region17: #{tpu_custom_call.1} parent=11 // pred_check
          %p418 = pneg %p122
        $region18: #{tpu_custom_call.1} parent=11 // pred_check_branch
          %420 = sbr.rel (%p418) target = $region20
        $region19: #{tpu_custom_call.1} parent=11 // pred_region
          _
        $region20: #{tpu_custom_call.1} parent=11 // pred_fallthru
          _
        // Predicated region
        $region21: #{tpu_custom_call.1} parent=11 // pred_check
          %p421 = pneg %p143
        $region22: #{tpu_custom_call.1} parent=11 // pred_check_branch
          %423 = sbr.rel (%p421) target = $region24
        $region23: #{tpu_custom_call.1} parent=11 // pred_region
          _
        $region24: #{tpu_custom_call.1} parent=11 // pred_fallthru
          _
        // Predicated region
        $region25: #{tpu_custom_call.1} parent=11 // pred_check
          %p424 = pneg %p164
        $region26: #{tpu_custom_call.1} parent=11 // pred_check_branch
          %426 = sbr.rel (%p424) target = $region28
        $region27: #{tpu_custom_call.1} parent=11 // pred_region
          _
        $region28: #{tpu_custom_call.1} parent=11 // pred_fallthru
          _
        // Predicated region
        $region29: #{tpu_custom_call.1} parent=11 // pred_check
          %p427 = pneg %p185
        $region30: #{tpu_custom_call.1} parent=11 // pred_check_branch
          %429 = sbr.rel (%p427) target = $region32
        $region31: #{tpu_custom_call.1} parent=11 // pred_region
          _
        $region32: #{tpu_custom_call.1} parent=11 // pred_fallthru
          _
        // Predicated region
        $region33: #{tpu_custom_call.1} parent=11 // pred_check
          %p430 = pneg %p206
        $region34: #{tpu_custom_call.1} parent=11 // pred_check_branch
          %432 = sbr.rel (%p430) target = $region36
        $region35: #{tpu_custom_call.1} parent=11 // pred_region
          _
        $region36: #{tpu_custom_call.1} parent=11 // pred_fallthru
          _
        // Predicated region
        $region37: #{tpu_custom_call.1} parent=11 // pred_check
          %p433 = pneg %p227
        $region38: #{tpu_custom_call.1} parent=11 // pred_check_branch
          %435 = sbr.rel (%p433) target = $region40
        $region39: #{tpu_custom_call.1} parent=11 // pred_region
          _
        $region40: #{tpu_custom_call.1} parent=11 // pred_fallthru
          _
        // Predicated region
        $region41: #{tpu_custom_call.1} parent=11 // pred_check
          %p436 = pneg %p248
        $region42: #{tpu_custom_call.1} parent=11 // pred_check_branch
          %438 = sbr.rel (%p436) target = $region44
        $region43: #{tpu_custom_call.1} parent=11 // pred_region
          _
        $region44: #{tpu_custom_call.1} parent=11 // pred_fallthru
          _
        // Predicated region
        $region45: #{tpu_custom_call.1} parent=11 // pred_check
          %p439 = pneg %p269
        $region46: #{tpu_custom_call.1} parent=11 // pred_check_branch
          %441 = sbr.rel (%p439) target = $region48
        $region47: #{tpu_custom_call.1} parent=11 // pred_region
          _
        $region48: #{tpu_custom_call.1} parent=11 // pred_fallthru
          _
        // Predicated region
        $region49: #{tpu_custom_call.1} parent=11 // pred_check
          %p442 = pneg %p290
        $region50: #{tpu_custom_call.1} parent=11 // pred_check_branch
          %444 = sbr.rel (%p442) target = $region52
        $region51: #{tpu_custom_call.1} parent=11 // pred_region
          _
        $region52: #{tpu_custom_call.1} parent=11 // pred_fallthru
          _
        // Predicated region
        $region53: #{tpu_custom_call.1} parent=11 // pred_check
          %p445 = pneg %p311
        $region54: #{tpu_custom_call.1} parent=11 // pred_check_branch
          %447 = sbr.rel (%p445) target = $region56
        $region55: #{tpu_custom_call.1} parent=11 // pred_region
          _
        $region56: #{tpu_custom_call.1} parent=11 // pred_fallthru
          _
        // Predicated region
        $region57: #{tpu_custom_call.1} parent=11 // pred_check
          %p448 = pneg %p332
        $region58: #{tpu_custom_call.1} parent=11 // pred_check_branch
          %450 = sbr.rel (%p448) target = $region60
        $region59: #{tpu_custom_call.1} parent=11 // pred_region
          _
        $region60: #{tpu_custom_call.1} parent=11 // pred_fallthru
          _
        // Predicated region
        $region61: #{tpu_custom_call.1} parent=11 // pred_check
          %p451 = pneg %p353
        $region62: #{tpu_custom_call.1} parent=11 // pred_check_branch
          %453 = sbr.rel (%p451) target = $region64
        $region63: #{tpu_custom_call.1} parent=11 // pred_region
          _
        $region64: #{tpu_custom_call.1} parent=11 // pred_fallthru
          _
        // Predicated region
        $region65: #{tpu_custom_call.1} parent=11 // pred_check
          %p454 = pneg %p374
        $region66: #{tpu_custom_call.1} parent=11 // pred_check_branch
          %456 = sbr.rel (%p454) target = $region68
        $region67: #{tpu_custom_call.1} parent=11 // pred_region
          _
        $region68: #{tpu_custom_call.1} parent=11 // pred_fallthru
          _
      $region12: #{tpu_custom_call.1} parent=5 // pred_fallthru
        _
      %p457 = scmp.lt.s32.totalorder %s28, 2
      // Predicated region
      $region69: #{tpu_custom_call.1} parent=5 // pred_check
        %p458 = pneg %p457
      $region70: #{tpu_custom_call.1} parent=5 // pred_check_branch
        %460 = sbr.rel (%p458) target = $region72
      $region71: #{tpu_custom_call.1} parent=5 // pred_region
        // Predicated region
        $region73: #{tpu_custom_call.1} parent=71 // pred_check
          %p461 = pneg %p48
        $region74: #{tpu_custom_call.1} parent=71 // pred_check_branch
          %463 = sbr.rel (%p461) target = $region76
        $region75: #{tpu_custom_call.1} parent=71 // pred_region
          %s464 = sand.u32 %s38, 1
          %s465 = scalar_lea.sflag [#allocation3], %s464
          %s466 = sand.u32 %s38, 1
          %s467 = smul.addr %s466, 8
          %s468 = scalar_lea.vmem [#allocation2], %s467
          %s470 = ssub.s32 128, 128
          %471 = vsyncadd %s465, %s470
          %s472 = smul.addr %s28, 128
          %s473 = scalar_lea.hbm %s0, %s472
          %s475 = sshll.u32 %s468, 4
          %s476 = int_to_ptr.vmem [resolvable:$true] %s475
          %478 = dma.hbm_to_vmem [thread:$0]  %s473, 128, %s476, %s465
        $region76: #{tpu_custom_call.1} parent=71 // pred_fallthru
          _
        // Predicated region
        $region77: #{tpu_custom_call.1} parent=71 // pred_check
          %p479 = pneg %p74
        $region78: #{tpu_custom_call.1} parent=71 // pred_check_branch
          %481 = sbr.rel (%p479) target = $region80
        $region79: #{tpu_custom_call.1} parent=71 // pred_region
          %p482 = scmp.lt.s32.totalorder %s28, 1
          %s483 = scalar_select %p482, %s28, 1
          %s484 = scalar_lea.vmem %s1, %s483
        $region80: #{tpu_custom_call.1} parent=71 // pred_fallthru
          _
      $region72: #{tpu_custom_call.1} parent=5 // pred_fallthru
        _
      %p485 = scmp.le.s32.totalorder 1, %s28
      %p486 = scmp.lt.s32.totalorder %s28, 3
      %p487 = pnand %p485, %p486
      %p488 = pneg %p487
      // Predicated region
      $region81: #{tpu_custom_call.1} parent=5 // pred_check
        _
      $region82: #{tpu_custom_call.1} parent=5 // pred_check_branch
        %490 = sbr.rel (%p487) target = $region84
      $region83: #{tpu_custom_call.1} parent=5 // pred_region
        %s491 = ssub.s32 %s28, 1
        %s492 = sand.u32 %s41, 1
        %s493 = scalar_lea.sflag [#allocation3], %s492
        %s494 = sand.u32 %s41, 1
        %s495 = smul.addr %s494, 8
        %s496 = scalar_lea.vmem [#allocation2], %s495
        // Predicated region
        $region85: #{tpu_custom_call.1} parent=83 // pred_check
          %p497 = pneg %p54
        $region86: #{tpu_custom_call.1} parent=83 // pred_check_branch
          %499 = sbr.rel (%p497) target = $region88
        $region87: #{tpu_custom_call.1} parent=83 // pred_region
          %500 = dma.done %s493, 128
        $region88: #{tpu_custom_call.1} parent=83 // pred_fallthru
          _
        %s501 = sand.u32 %s41, 1
        %s502 = scalar_lea.sflag [#allocation3], %s501
        %s503 = sand.u32 %s41, 1
        %s504 = smul.addr %s503, 8
        %s505 = scalar_lea.vmem [#allocation2], %s504
        %p506 = pneg %p54
        %p507 = pneg %p51
        %p508 = scmp.lt.s32.totalorder %s33, 1
        %s509 = scalar_select %p508, %s33, 1
        %s510 = scalar_lea.vmem %s1, %s509
        %p511 = pneg %p80
        %p512 = pneg %p77
        %p513 = pneg %p101
        %p514 = pneg %p98
        %p515 = pneg %p122
        %p516 = pneg %p119
        %p517 = pneg %p143
        %p518 = pneg %p140
        %p519 = pneg %p164
        %p520 = pneg %p161
        %p521 = pneg %p185
        %p522 = pneg %p182
        %p523 = pneg %p206
        %p524 = pneg %p203
        %p525 = pneg %p227
        %p526 = pneg %p224
        %p527 = pneg %p248
        %p528 = pneg %p245
        %p529 = pneg %p269
        %p530 = pneg %p266
        %p531 = pneg %p290
        %p532 = pneg %p287
        %p533 = pneg %p311
        %p534 = pneg %p308
        %p535 = pneg %p332
        %p536 = pneg %p329
        %p537 = pneg %p353
        %p538 = pneg %p350
        %p539 = pneg %p374
        %p540 = pneg %p371
        %p541 = pneg %p400
        %p542 = pneg %p397
        %s543 = sand.u32 %s387, 1
        %s544 = scalar_lea.sflag [#allocation4], %s543
        %s545 = sand.u32 %s387, 1
        %s546 = smul.addr %s545, 8
        %s547 = scalar_lea.vmem [#allocation5], %s546
        %p548 = scmp.lt.s32.totalorder %s33, 1
        %s549 = scalar_select %p548, %s33, 1
        %s550 = scalar_lea.vmem %s1, %s549
        %v551 = vld [vmem:[%s496] sm:$0xff]
        %v552 = vld [vmem:[%s550] sm:$0x1]
        %v553 = vld [vmem:[%s4] sm:$0x1]
        %v554 = vld [vmem:[%s5] sm:$0x1]
        %v555 = vld [vmem:[%s2] sm:$0x1]
        %v557 = vlaneseq
        %v558 = vshrl.u32 %v557, 7
        %v559 = vsub.s32 0, %v558
        %v560 = vrot.slane %v555, %v559
        %v562 = vmul.f32 %v551, %v560
        %v563 = vld [vmem:[%s3] sm:$0x1]
        %v565 = vlaneseq
        %v566 = vshrl.u32 %v565, 7
        %v567 = vsub.s32 0, %v566
        %v568 = vrot.slane %v563, %v567
        %v570 = vadd.f32 %v562, %v568
        %vm571 = vcmask 261120
        %v572 = vsel %vm571, %v570, 0.0
        %573 = vadd.xlane.f32.xlu0 %v572
        %v574 = vpop.xlane.xlu0 %573
        %v575 = vrcp.pop 32.0
        %v576 = vmul.f32 %v574, %v575
        %v577 = vsub.f32 %v570, %v576
        %v578 = vmul.f32 %v577, %v577
        %v579 = vsel %vm571, %v578, 0.0
        %580 = vadd.xlane.f32.xlu0 %v579
        %v581 = vpop.xlane.xlu0 %580
        %v582 = vmul.f32 %v581, %v575
        %v583 = vadd.f32 %v582, 1e-05
        %v584 = vrsqrt.pop %v583
        %v585 = vmul.f32 %v577, %v584
        %v587 = vlaneseq
        %v588 = vshrl.u32 %v587, 7
        %v589 = vsub.s32 0, %v588
        %v590 = vrot.slane %v553, %v589
        %v592 = vmul.f32 %v585, %v590
        %v594 = vlaneseq
        %v595 = vshrl.u32 %v594, 7
        %v596 = vsub.s32 0, %v595
        %v597 = vrot.slane %v554, %v596
        %v599 = vadd.f32 %v592, %v597
        %v600 = vld [vmem:[%s6] sm:$0xff]
        %v601 = vld [vmem:[%s6 + $0x8] sm:$0xff]
        %v602 = vld [vmem:[%s6 + $0x10] sm:$0xff]
        %v603 = vld [vmem:[%s6 + $0x18] sm:$0xff]
        %v604 = vld [vmem:[%s7] sm:$0x1]
        %v606 = vlaneseq
        %v607 = vshrl.u32 %v606, 7
        %v608 = vsub.s32 0, %v607
        %v609 = vrot.slane %v604, %v608
        %v612 = vsel %vm571, %v599, 0
        %614 = vmatprep.subr.mxu0 0.0
        %615 = vmatpush1.msra.mxu0 %v600
        %616 = vmatprep.subr.mxu0 0.0
        %617 = vmatpush1.msra.mxu0 %v601
        %618 = vmatprep.subr.mxu0 0.0
        %619 = vmatpush1.msra.mxu0 %v602
        %620 = vmatprep.subr.mxu0 0.0
        %621 = vmatpush1.msra.mxu0 %v603
        %622 = vmatprep.subr.mxu0 0.0
        %623 = vmatpush1.msra.mxu0 0.0
        %624 = vmatprep.subr.mxu0 0.0
        %625 = vmatpush1.msra.mxu0 0.0
        %626 = vmatprep.subr.mxu0 0.0
        %627 = vmatpush1.msra.mxu0 0.0
        %628 = vmatprep.subr.mxu0 0.0
        %629 = vmatpush1.msra.mxu0 0.0
        %630 = vmatprep.subr.mxu0 0.0
        %631 = vmatpush1.msra.mxu0 0.0
        %632 = vmatprep.subr.mxu0 0.0
        %633 = vmatpush1.msra.mxu0 0.0
        %634 = vmatprep.subr.mxu0 0.0
        %635 = vmatpush1.msra.mxu0 0.0
        %636 = vmatprep.subr.mxu0 0.0
        %637 = vmatpush1.msra.mxu0 0.0
        %638 = vmatprep.subr.mxu0 0.0
        %639 = vmatpush1.msra.mxu0 0.0
        %640 = vmatprep.subr.mxu0 0.0
        %641 = vmatpush1.msra.mxu0 0.0
        %642 = vmatprep.subr.mxu0 0.0
        %643 = vmatpush1.msra.mxu0 0.0
        %644 = vmatprep.subr.mxu0 0.0
        %645 = vmatpush1.msra.mxu0 0.0
        %646 = vmatprep.subr.mxu0 0.0
        %647 = vmatpush1.msra.mxu0 0.0
        %648 = vmatprep.subr.mxu0 0.0
        %649 = vmatpush1.msra.mxu0 0.0
        %650 = vmatprep.subr.mxu0 0.0
        %651 = vmatpush1.msra.mxu0 0.0
        %652 = vmatprep.subr.mxu0 0.0
        %653 = vmatpush1.msra.mxu0 0.0
        %654 = vmatprep.subr.mxu0 0.0
        %655 = vmatpush1.msra.mxu0 0.0
        %656 = vmatprep.subr.mxu0 0.0
        %657 = vmatpush1.msra.mxu0 0.0
        %658 = vmatprep.subr.mxu0 0.0
        %659 = vmatpush1.msra.mxu0 0.0
        %660 = vmatprep.subr.mxu0 0.0
        %661 = vmatpush1.msra.mxu0 0.0
        %662 = vmatprep.subr.mxu0 0.0
        %663 = vmatpush1.msra.mxu0 0.0
        %664 = vmatprep.subr.mxu0 0.0
        %665 = vmatpush1.msra.mxu0 0.0
        %666 = vmatprep.subr.mxu0 0.0
        %667 = vmatpush1.msra.mxu0 0.0
        %668 = vmatprep.subr.mxu0 0.0
        %669 = vmatpush1.msra.mxu0 0.0
        %670 = vmatprep.subr.mxu0 0.0
        %671 = vmatpush1.msra.mxu0 0.0
        %672 = vmatprep.subr.mxu0 0.0
        %673 = vmatpush1.msra.mxu0 0.0
        %674 = vmatprep.subr.mxu0 0.0
        %675 = vmatpush1.msra.mxu0 0.0
        %676 = vmatprep.subr.mxu0 0.0
        %677 = vmatpush1.msra.mxu0 0.0
        %678 = vmatprep.mubr.f32.mxu0 0.0
        %679 = vmatmul.mubr.f32.gmra.mrb[0].mxu0 %v612
        %v680 = vpop.f32.mrb[0].mxu0
        %v681 = vadd.f32 %v609, %v680
        %v682 = vpop.f32.mrb[0].mxu0
        %683 = vdwg.mxu0
        %v684 = vmul.f32 %v681, 0.35355338
        %v685 = vsub.f32 %v552, 1.0
        %v686 = vmul.f32 %v685, 1e+10
        %v687 = vld [vmem:[%s8] sm:$0xff]
        %v688 = vld [vmem:[%s8 + $0x8] sm:$0xff]
        %v689 = vld [vmem:[%s8 + $0x10] sm:$0xff]
        %v690 = vld [vmem:[%s8 + $0x18] sm:$0xff]
        %v691 = vld [vmem:[%s9] sm:$0x1]
        %v693 = vlaneseq
        %v694 = vshrl.u32 %v693, 7
        %v695 = vsub.s32 0, %v694
        %v696 = vrot.slane %v691, %v695
        %v698 = vadd.f32 %v551, %v696
        %v700 = vlaneseq
        %v701 = vshrl.u32 %v700, 7
        %v702 = vsub.s32 0, %v701
        %v703 = vrot.slane %v686, %v702
        %706 = vrot.lane.b32.xlu0 %v681, 96
        %v707 = vpop.permute.xlu0 %706
        %vm708 = vcmask 64512
        %v710 = vsel %vm708, %v684, 0
        %v712 = vsel %vm708, %v707, 0
        %714 = vmatprep.subr.mxu0 0.0
        %715 = vmatpush1.xpose.msra.mxu0 %v712
        %716 = vmatprep.subr.mxu0 0.0
        %717 = vmatpush1.xpose.msra.mxu0 0.0
        %718 = vmatprep.subr.mxu0 0.0
        %719 = vmatpush1.xpose.msra.mxu0 0.0
        %720 = vmatprep.subr.mxu0 0.0
        %721 = vmatpush1.xpose.msra.mxu0 0.0
        %722 = vmatprep.subr.mxu0 0.0
        %723 = vmatpush1.xpose.msra.mxu0 0.0
        %724 = vmatprep.subr.mxu0 0.0
        %725 = vmatpush1.xpose.msra.mxu0 0.0
        %726 = vmatprep.subr.mxu0 0.0
        %727 = vmatpush1.xpose.msra.mxu0 0.0
        %728 = vmatprep.subr.mxu0 0.0
        %729 = vmatpush1.xpose.msra.mxu0 0.0
        %730 = vmatprep.subr.mxu0 0.0
        %731 = vmatpush1.xpose.msra.mxu0 0.0
        %732 = vmatprep.subr.mxu0 0.0
        %733 = vmatpush1.xpose.msra.mxu0 0.0
        %734 = vmatprep.subr.mxu0 0.0
        %735 = vmatpush1.xpose.msra.mxu0 0.0
        %736 = vmatprep.subr.mxu0 0.0
        %737 = vmatpush1.xpose.msra.mxu0 0.0
        %738 = vmatprep.subr.mxu0 0.0
        %739 = vmatpush1.xpose.msra.mxu0 0.0
        %740 = vmatprep.subr.mxu0 0.0
        %741 = vmatpush1.xpose.msra.mxu0 0.0
        %742 = vmatprep.subr.mxu0 0.0
        %743 = vmatpush1.xpose.msra.mxu0 0.0
        %744 = vmatprep.subr.mxu0 0.0
        %745 = vmatpush1.xpose.msra.mxu0 0.0
        %746 = vmatprep.subr.mxu0 0.0
        %747 = vmatpush1.xpose.msra.mxu0 0.0
        %748 = vmatprep.subr.mxu0 0.0
        %749 = vmatpush1.xpose.msra.mxu0 0.0
        %750 = vmatprep.subr.mxu0 0.0
        %751 = vmatpush1.xpose.msra.mxu0 0.0
        %752 = vmatprep.subr.mxu0 0.0
        %753 = vmatpush1.xpose.msra.mxu0 0.0
        %754 = vmatprep.subr.mxu0 0.0
        %755 = vmatpush1.xpose.msra.mxu0 0.0
        %756 = vmatprep.subr.mxu0 0.0
        %757 = vmatpush1.xpose.msra.mxu0 0.0
        %758 = vmatprep.subr.mxu0 0.0
        %759 = vmatpush1.xpose.msra.mxu0 0.0
        %760 = vmatprep.subr.mxu0 0.0
        %761 = vmatpush1.xpose.msra.mxu0 0.0
        %762 = vmatprep.subr.mxu0 0.0
        %763 = vmatpush1.xpose.msra.mxu0 0.0
        %764 = vmatprep.subr.mxu0 0.0
        %765 = vmatpush1.xpose.msra.mxu0 0.0
        %766 = vmatprep.subr.mxu0 0.0
        %767 = vmatpush1.xpose.msra.mxu0 0.0
        %768 = vmatprep.subr.mxu0 0.0
        %769 = vmatpush1.xpose.msra.mxu0 0.0
        %770 = vmatprep.subr.mxu0 0.0
        %771 = vmatpush1.xpose.msra.mxu0 0.0
        %772 = vmatprep.subr.mxu0 0.0
        %773 = vmatpush1.xpose.msra.mxu0 0.0
        %774 = vmatprep.subr.mxu0 0.0
        %775 = vmatpush1.xpose.msra.mxu0 0.0
        %776 = vmatprep.subr.mxu0 0.0
        %777 = vmatpush1.xpose.msra.mxu0 0.0
        %778 = vmatprep.mubr.f32.mxu0 0.0
        %779 = vmatmul.mubr.f32.gmra.mrb[0].mxu0 %v710
        %v780 = vpop.f32.mrb[0].mxu0
        %v781 = vadd.f32 %v703, %v780
        %v782 = vpop.f32.mrb[0].mxu0
        %783 = vdwg.mxu0
        %v784 = vsel %vm708, %v781, -inf
        %785 = vmax.xlane.f32.xlu0 %v784
        %v786 = vpop.xlane.xlu0 %785
        %v787 = vsub.f32 %v781, %v786
        %v788 = vmul.f32 %v787, 1.442695
        %v789 = vpow.pop %v788
        %v790 = vsel %vm708, %v789, 0.0
        %791 = vadd.xlane.f32.xlu0 %v790
        %v792 = vpop.xlane.xlu0 %791
        %v793 = vrcp.pop %v792
        %794 = vrot.lane.b32.xlu0 %v681, 64
        %v795 = vpop.permute.xlu0 %794
        %v798 = vsel %vm708, %v789, 0
        %800 = vmatprep.subr.mxu0 0.0
        %801 = vmatpush1.msra.mxu0 %v795
        %802 = vmatprep.subr.mxu0 0.0
        %803 = vmatpush1.msra.mxu0 0.0
        %804 = vmatprep.subr.mxu0 0.0
        %805 = vmatpush1.msra.mxu0 0.0
        %806 = vmatprep.subr.mxu0 0.0
        %807 = vmatpush1.msra.mxu0 0.0
        %808 = vmatprep.subr.mxu0 0.0
        %809 = vmatpush1.msra.mxu0 0.0
        %810 = vmatprep.subr.mxu0 0.0
        %811 = vmatpush1.msra.mxu0 0.0
        %812 = vmatprep.subr.mxu0 0.0
        %813 = vmatpush1.msra.mxu0 0.0
        %814 = vmatprep.subr.mxu0 0.0
        %815 = vmatpush1.msra.mxu0 0.0
        %816 = vmatprep.subr.mxu0 0.0
        %817 = vmatpush1.msra.mxu0 0.0
        %818 = vmatprep.subr.mxu0 0.0
        %819 = vmatpush1.msra.mxu0 0.0
        %820 = vmatprep.subr.mxu0 0.0
        %821 = vmatpush1.msra.mxu0 0.0
        %822 = vmatprep.subr.mxu0 0.0
        %823 = vmatpush1.msra.mxu0 0.0
        %824 = vmatprep.subr.mxu0 0.0
        %825 = vmatpush1.msra.mxu0 0.0
        %826 = vmatprep.subr.mxu0 0.0
        %827 = vmatpush1.msra.mxu0 0.0
        %828 = vmatprep.subr.mxu0 0.0
        %829 = vmatpush1.msra.mxu0 0.0
        %830 = vmatprep.subr.mxu0 0.0
        %831 = vmatpush1.msra.mxu0 0.0
        %832 = vmatprep.subr.mxu0 0.0
        %833 = vmatpush1.msra.mxu0 0.0
        %834 = vmatprep.subr.mxu0 0.0
        %835 = vmatpush1.msra.mxu0 0.0
        %836 = vmatprep.subr.mxu0 0.0
        %837 = vmatpush1.msra.mxu0 0.0
        %838 = vmatprep.subr.mxu0 0.0
        %839 = vmatpush1.msra.mxu0 0.0
        %840 = vmatprep.subr.mxu0 0.0
        %841 = vmatpush1.msra.mxu0 0.0
        %842 = vmatprep.subr.mxu0 0.0
        %843 = vmatpush1.msra.mxu0 0.0
        %844 = vmatprep.subr.mxu0 0.0
        %845 = vmatpush1.msra.mxu0 0.0
        %846 = vmatprep.subr.mxu0 0.0
        %847 = vmatpush1.msra.mxu0 0.0
        %848 = vmatprep.subr.mxu0 0.0
        %849 = vmatpush1.msra.mxu0 0.0
        %850 = vmatprep.subr.mxu0 0.0
        %851 = vmatpush1.msra.mxu0 0.0
        %852 = vmatprep.subr.mxu0 0.0
        %853 = vmatpush1.msra.mxu0 0.0
        %854 = vmatprep.subr.mxu0 0.0
        %855 = vmatpush1.msra.mxu0 0.0
        %856 = vmatprep.subr.mxu0 0.0
        %857 = vmatpush1.msra.mxu0 0.0
        %858 = vmatprep.subr.mxu0 0.0
        %859 = vmatpush1.msra.mxu0 0.0
        %860 = vmatprep.subr.mxu0 0.0
        %861 = vmatpush1.msra.mxu0 0.0
        %862 = vmatprep.subr.mxu0 0.0
        %863 = vmatpush1.msra.mxu0 0.0
        %864 = vmatprep.mubr.f32.mxu0 0.0
        %865 = vmatmul.mubr.f32.gmra.mrb[0].mxu0 %v798
        %v866 = vpop.f32.mrb[0].mxu0
        %v867 = vadd.f32 0.0, %v866
        %v868 = vpop.f32.mrb[0].mxu0
        %869 = vdwg.mxu0
        %v870 = vmul.f32 %v867, %v793
        %v872 = vsel %vm708, %v870, 0
        %874 = vmatprep.subr.mxu0 0.0
        %875 = vmatpush1.msra.mxu0 %v687
        %876 = vmatprep.subr.mxu0 0.0
        %877 = vmatpush1.msra.mxu0 0.0
        %878 = vmatprep.subr.mxu0 0.0
        %879 = vmatpush1.msra.mxu0 0.0
        %880 = vmatprep.subr.mxu0 0.0
        %881 = vmatpush1.msra.mxu0 0.0
        %882 = vmatprep.subr.mxu0 0.0
        %883 = vmatpush1.msra.mxu0 0.0
        %884 = vmatprep.subr.mxu0 0.0
        %885 = vmatpush1.msra.mxu0 0.0
        %886 = vmatprep.subr.mxu0 0.0
        %887 = vmatpush1.msra.mxu0 0.0
        %888 = vmatprep.subr.mxu0 0.0
        %889 = vmatpush1.msra.mxu0 0.0
        %890 = vmatprep.subr.mxu0 0.0
        %891 = vmatpush1.msra.mxu0 0.0
        %892 = vmatprep.subr.mxu0 0.0
        %893 = vmatpush1.msra.mxu0 0.0
        %894 = vmatprep.subr.mxu0 0.0
        %895 = vmatpush1.msra.mxu0 0.0
        %896 = vmatprep.subr.mxu0 0.0
        %897 = vmatpush1.msra.mxu0 0.0
        %898 = vmatprep.subr.mxu0 0.0
        %899 = vmatpush1.msra.mxu0 0.0
        %900 = vmatprep.subr.mxu0 0.0
        %901 = vmatpush1.msra.mxu0 0.0
        %902 = vmatprep.subr.mxu0 0.0
        %903 = vmatpush1.msra.mxu0 0.0
        %904 = vmatprep.subr.mxu0 0.0
        %905 = vmatpush1.msra.mxu0 0.0
        %906 = vmatprep.subr.mxu0 0.0
        %907 = vmatpush1.msra.mxu0 0.0
        %908 = vmatprep.subr.mxu0 0.0
        %909 = vmatpush1.msra.mxu0 0.0
        %910 = vmatprep.subr.mxu0 0.0
        %911 = vmatpush1.msra.mxu0 0.0
        %912 = vmatprep.subr.mxu0 0.0
        %913 = vmatpush1.msra.mxu0 0.0
        %914 = vmatprep.subr.mxu0 0.0
        %915 = vmatpush1.msra.mxu0 0.0
        %916 = vmatprep.subr.mxu0 0.0
        %917 = vmatpush1.msra.mxu0 0.0
        %918 = vmatprep.subr.mxu0 0.0
        %919 = vmatpush1.msra.mxu0 0.0
        %920 = vmatprep.subr.mxu0 0.0
        %921 = vmatpush1.msra.mxu0 0.0
        %922 = vmatprep.subr.mxu0 0.0
        %923 = vmatpush1.msra.mxu0 0.0
        %924 = vmatprep.subr.mxu0 0.0
        %925 = vmatpush1.msra.mxu0 0.0
        %926 = vmatprep.subr.mxu0 0.0
        %927 = vmatpush1.msra.mxu0 0.0
        %928 = vmatprep.subr.mxu0 0.0
        %929 = vmatpush1.msra.mxu0 0.0
        %930 = vmatprep.subr.mxu0 0.0
        %931 = vmatpush1.msra.mxu0 0.0
        %932 = vmatprep.subr.mxu0 0.0
        %933 = vmatpush1.msra.mxu0 0.0
        %934 = vmatprep.subr.mxu0 0.0
        %935 = vmatpush1.msra.mxu0 0.0
        %936 = vmatprep.subr.mxu0 0.0
        %937 = vmatpush1.msra.mxu0 0.0
        %938 = vmatprep.mubr.f32.mxu0 0.0
        %939 = vmatmul.mubr.f32.gmra.mrb[0].mxu0 %v872
        %v940 = vpop.f32.mrb[0].mxu0
        %v941 = vadd.f32 0.0, %v940
        %v942 = vpop.f32.mrb[0].mxu0
        %943 = vdwg.mxu0
        %v944 = vadd.f32 %v698, %v941
        %945 = vrot.lane.b32.xlu0 %v684, 120
        %v946 = vpop.permute.xlu0 %945
        %947 = vrot.lane.b32.xlu0 %v681, 88
        %v948 = vpop.permute.xlu0 %947
        %v949 = vsel %vm708, %v946, 0
        %v951 = vsel %vm708, %v948, 0
        %953 = vmatprep.subr.mxu0 0.0
        %954 = vmatpush1.xpose.msra.mxu0 %v951
        %955 = vmatprep.subr.mxu0 0.0
        %956 = vmatpush1.xpose.msra.mxu0 0.0
        %957 = vmatprep.subr.mxu0 0.0
        %958 = vmatpush1.xpose.msra.mxu0 0.0
        %959 = vmatprep.subr.mxu0 0.0
        %960 = vmatpush1.xpose.msra.mxu0 0.0
        %961 = vmatprep.subr.mxu0 0.0
        %962 = vmatpush1.xpose.msra.mxu0 0.0
        %963 = vmatprep.subr.mxu0 0.0
        %964 = vmatpush1.xpose.msra.mxu0 0.0
        %965 = vmatprep.subr.mxu0 0.0
        %966 = vmatpush1.xpose.msra.mxu0 0.0
        %967 = vmatprep.subr.mxu0 0.0
        %968 = vmatpush1.xpose.msra.mxu0 0.0
        %969 = vmatprep.subr.mxu0 0.0
        %970 = vmatpush1.xpose.msra.mxu0 0.0
        %971 = vmatprep.subr.mxu0 0.0
        %972 = vmatpush1.xpose.msra.mxu0 0.0
        %973 = vmatprep.subr.mxu0 0.0
        %974 = vmatpush1.xpose.msra.mxu0 0.0
        %975 = vmatprep.subr.mxu0 0.0
        %976 = vmatpush1.xpose.msra.mxu0 0.0
        %977 = vmatprep.subr.mxu0 0.0
        %978 = vmatpush1.xpose.msra.mxu0 0.0
        %979 = vmatprep.subr.mxu0 0.0
        %980 = vmatpush1.xpose.msra.mxu0 0.0
        %981 = vmatprep.subr.mxu0 0.0
        %982 = vmatpush1.xpose.msra.mxu0 0.0
        %983 = vmatprep.subr.mxu0 0.0
        %984 = vmatpush1.xpose.msra.mxu0 0.0
        %985 = vmatprep.subr.mxu0 0.0
        %986 = vmatpush1.xpose.msra.mxu0 0.0
        %987 = vmatprep.subr.mxu0 0.0
        %988 = vmatpush1.xpose.msra.mxu0 0.0
        %989 = vmatprep.subr.mxu0 0.0
        %990 = vmatpush1.xpose.msra.mxu0 0.0
        %991 = vmatprep.subr.mxu0 0.0
        %992 = vmatpush1.xpose.msra.mxu0 0.0
        %993 = vmatprep.subr.mxu0 0.0
        %994 = vmatpush1.xpose.msra.mxu0 0.0
        %995 = vmatprep.subr.mxu0 0.0
        %996 = vmatpush1.xpose.msra.mxu0 0.0
        %997 = vmatprep.subr.mxu0 0.0
        %998 = vmatpush1.xpose.msra.mxu0 0.0
        %999 = vmatprep.subr.mxu0 0.0
        %1000 = vmatpush1.xpose.msra.mxu0 0.0
        %1001 = vmatprep.subr.mxu0 0.0
        %1002 = vmatpush1.xpose.msra.mxu0 0.0
        %1003 = vmatprep.subr.mxu0 0.0
        %1004 = vmatpush1.xpose.msra.mxu0 0.0
        %1005 = vmatprep.subr.mxu0 0.0
        %1006 = vmatpush1.xpose.msra.mxu0 0.0
        %1007 = vmatprep.subr.mxu0 0.0
        %1008 = vmatpush1.xpose.msra.mxu0 0.0
        %1009 = vmatprep.subr.mxu0 0.0
        %1010 = vmatpush1.xpose.msra.mxu0 0.0
        %1011 = vmatprep.subr.mxu0 0.0
        %1012 = vmatpush1.xpose.msra.mxu0 0.0
        %1013 = vmatprep.subr.mxu0 0.0
        %1014 = vmatpush1.xpose.msra.mxu0 0.0
        %1015 = vmatprep.subr.mxu0 0.0
        %1016 = vmatpush1.xpose.msra.mxu0 0.0
        %1017 = vmatprep.mubr.f32.mxu0 0.0
        %1018 = vmatmul.mubr.f32.gmra.mrb[0].mxu0 %v949
        %v1019 = vpop.f32.mrb[0].mxu0
        %v1020 = vadd.f32 %v703, %v1019
        %v1021 = vpop.f32.mrb[0].mxu0
        %1022 = vdwg.mxu0
        %v1023 = vsel %vm708, %v1020, -inf
        %1024 = vmax.xlane.f32.xlu0 %v1023
        %v1025 = vpop.xlane.xlu0 %1024
        %v1026 = vsub.f32 %v1020, %v1025
        %v1027 = vmul.f32 %v1026, 1.442695
        %v1028 = vpow.pop %v1027
        %v1029 = vsel %vm708, %v1028, 0.0
        %1030 = vadd.xlane.f32.xlu0 %v1029
        %v1031 = vpop.xlane.xlu0 %1030
        %v1032 = vrcp.pop %v1031
        %1033 = vrot.lane.b32.xlu0 %v681, 56
        %v1034 = vpop.permute.xlu0 %1033
        %v1037 = vsel %vm708, %v1028, 0
        %1039 = vmatprep.subr.mxu0 0.0
        %1040 = vmatpush1.msra.mxu0 %v1034
        %1041 = vmatprep.subr.mxu0 0.0
        %1042 = vmatpush1.msra.mxu0 0.0
        %1043 = vmatprep.subr.mxu0 0.0
        %1044 = vmatpush1.msra.mxu0 0.0
        %1045 = vmatprep.subr.mxu0 0.0
        %1046 = vmatpush1.msra.mxu0 0.0
        %1047 = vmatprep.subr.mxu0 0.0
        %1048 = vmatpush1.msra.mxu0 0.0
        %1049 = vmatprep.subr.mxu0 0.0
        %1050 = vmatpush1.msra.mxu0 0.0
        %1051 = vmatprep.subr.mxu0 0.0
        %1052 = vmatpush1.msra.mxu0 0.0
        %1053 = vmatprep.subr.mxu0 0.0
        %1054 = vmatpush1.msra.mxu0 0.0
        %1055 = vmatprep.subr.mxu0 0.0
        %1056 = vmatpush1.msra.mxu0 0.0
        %1057 = vmatprep.subr.mxu0 0.0
        %1058 = vmatpush1.msra.mxu0 0.0
        %1059 = vmatprep.subr.mxu0 0.0
        %1060 = vmatpush1.msra.mxu0 0.0
        %1061 = vmatprep.subr.mxu0 0.0
        %1062 = vmatpush1.msra.mxu0 0.0
        %1063 = vmatprep.subr.mxu0 0.0
        %1064 = vmatpush1.msra.mxu0 0.0
        %1065 = vmatprep.subr.mxu0 0.0
        %1066 = vmatpush1.msra.mxu0 0.0
        %1067 = vmatprep.subr.mxu0 0.0
        %1068 = vmatpush1.msra.mxu0 0.0
        %1069 = vmatprep.subr.mxu0 0.0
        %1070 = vmatpush1.msra.mxu0 0.0
        %1071 = vmatprep.subr.mxu0 0.0
        %1072 = vmatpush1.msra.mxu0 0.0
        %1073 = vmatprep.subr.mxu0 0.0
        %1074 = vmatpush1.msra.mxu0 0.0
        %1075 = vmatprep.subr.mxu0 0.0
        %1076 = vmatpush1.msra.mxu0 0.0
        %1077 = vmatprep.subr.mxu0 0.0
        %1078 = vmatpush1.msra.mxu0 0.0
        %1079 = vmatprep.subr.mxu0 0.0
        %1080 = vmatpush1.msra.mxu0 0.0
        %1081 = vmatprep.subr.mxu0 0.0
        %1082 = vmatpush1.msra.mxu0 0.0
        %1083 = vmatprep.subr.mxu0 0.0
        %1084 = vmatpush1.msra.mxu0 0.0
        %1085 = vmatprep.subr.mxu0 0.0
        %1086 = vmatpush1.msra.mxu0 0.0
        %1087 = vmatprep.subr.mxu0 0.0
        %1088 = vmatpush1.msra.mxu0 0.0
        %1089 = vmatprep.subr.mxu0 0.0
        %1090 = vmatpush1.msra.mxu0 0.0
        %1091 = vmatprep.subr.mxu0 0.0
        %1092 = vmatpush1.msra.mxu0 0.0
        %1093 = vmatprep.subr.mxu0 0.0
        %1094 = vmatpush1.msra.mxu0 0.0
        %1095 = vmatprep.subr.mxu0 0.0
        %1096 = vmatpush1.msra.mxu0 0.0
        %1097 = vmatprep.subr.mxu0 0.0
        %1098 = vmatpush1.msra.mxu0 0.0
        %1099 = vmatprep.subr.mxu0 0.0
        %1100 = vmatpush1.msra.mxu0 0.0
        %1101 = vmatprep.subr.mxu0 0.0
        %1102 = vmatpush1.msra.mxu0 0.0
        %1103 = vmatprep.mubr.f32.mxu0 0.0
        %1104 = vmatmul.mubr.f32.gmra.mrb[0].mxu0 %v1037
        %v1105 = vpop.f32.mrb[0].mxu0
        %v1106 = vadd.f32 0.0, %v1105
        %v1107 = vpop.f32.mrb[0].mxu0
        %1108 = vdwg.mxu0
        %v1109 = vmul.f32 %v1106, %v1032
        %v1111 = vsel %vm708, %v1109, 0
        %1113 = vmatprep.subr.mxu0 0.0
        %1114 = vmatpush1.msra.mxu0 %v688
        %1115 = vmatprep.subr.mxu0 0.0
        %1116 = vmatpush1.msra.mxu0 0.0
        %1117 = vmatprep.subr.mxu0 0.0
        %1118 = vmatpush1.msra.mxu0 0.0
        %1119 = vmatprep.subr.mxu0 0.0
        %1120 = vmatpush1.msra.mxu0 0.0
        %1121 = vmatprep.subr.mxu0 0.0
        %1122 = vmatpush1.msra.mxu0 0.0
        %1123 = vmatprep.subr.mxu0 0.0
        %1124 = vmatpush1.msra.mxu0 0.0
        %1125 = vmatprep.subr.mxu0 0.0
        %1126 = vmatpush1.msra.mxu0 0.0
        %1127 = vmatprep.subr.mxu0 0.0
        %1128 = vmatpush1.msra.mxu0 0.0
        %1129 = vmatprep.subr.mxu0 0.0
        %1130 = vmatpush1.msra.mxu0 0.0
        %1131 = vmatprep.subr.mxu0 0.0
        %1132 = vmatpush1.msra.mxu0 0.0
        %1133 = vmatprep.subr.mxu0 0.0
        %1134 = vmatpush1.msra.mxu0 0.0
        %1135 = vmatprep.subr.mxu0 0.0
        %1136 = vmatpush1.msra.mxu0 0.0
        %1137 = vmatprep.subr.mxu0 0.0
        %1138 = vmatpush1.msra.mxu0 0.0
        %1139 = vmatprep.subr.mxu0 0.0
        %1140 = vmatpush1.msra.mxu0 0.0
        %1141 = vmatprep.subr.mxu0 0.0
        %1142 = vmatpush1.msra.mxu0 0.0
        %1143 = vmatprep.subr.mxu0 0.0
        %1144 = vmatpush1.msra.mxu0 0.0
        %1145 = vmatprep.subr.mxu0 0.0
        %1146 = vmatpush1.msra.mxu0 0.0
        %1147 = vmatprep.subr.mxu0 0.0
        %1148 = vmatpush1.msra.mxu0 0.0
        %1149 = vmatprep.subr.mxu0 0.0
        %1150 = vmatpush1.msra.mxu0 0.0
        %1151 = vmatprep.subr.mxu0 0.0
        %1152 = vmatpush1.msra.mxu0 0.0
        %1153 = vmatprep.subr.mxu0 0.0
        %1154 = vmatpush1.msra.mxu0 0.0
        %1155 = vmatprep.subr.mxu0 0.0
        %1156 = vmatpush1.msra.mxu0 0.0
        %1157 = vmatprep.subr.mxu0 0.0
        %1158 = vmatpush1.msra.mxu0 0.0
        %1159 = vmatprep.subr.mxu0 0.0
        %1160 = vmatpush1.msra.mxu0 0.0
        %1161 = vmatprep.subr.mxu0 0.0
        %1162 = vmatpush1.msra.mxu0 0.0
        %1163 = vmatprep.subr.mxu0 0.0
        %1164 = vmatpush1.msra.mxu0 0.0
        %1165 = vmatprep.subr.mxu0 0.0
        %1166 = vmatpush1.msra.mxu0 0.0
        %1167 = vmatprep.subr.mxu0 0.0
        %1168 = vmatpush1.msra.mxu0 0.0
        %1169 = vmatprep.subr.mxu0 0.0
        %1170 = vmatpush1.msra.mxu0 0.0
        %1171 = vmatprep.subr.mxu0 0.0
        %1172 = vmatpush1.msra.mxu0 0.0
        %1173 = vmatprep.subr.mxu0 0.0
        %1174 = vmatpush1.msra.mxu0 0.0
        %1175 = vmatprep.subr.mxu0 0.0
        %1176 = vmatpush1.msra.mxu0 0.0
        %1177 = vmatprep.mubr.f32.mxu0 0.0
        %1178 = vmatmul.mubr.f32.gmra.mrb[0].mxu0 %v1111
        %v1179 = vpop.f32.mrb[0].mxu0
        %v1180 = vadd.f32 0.0, %v1179
        %v1181 = vpop.f32.mrb[0].mxu0
        %1182 = vdwg.mxu0
        %v1183 = vadd.f32 %v944, %v1180
        %1184 = vrot.lane.b32.xlu0 %v684, 112
        %v1185 = vpop.permute.xlu0 %1184
        %1186 = vrot.lane.b32.xlu0 %v681, 80
        %v1187 = vpop.permute.xlu0 %1186
        %v1188 = vsel %vm708, %v1185, 0
        %v1190 = vsel %vm708, %v1187, 0
        %1192 = vmatprep.subr.mxu0 0.0
        %1193 = vmatpush1.xpose.msra.mxu0 %v1190
        %1194 = vmatprep.subr.mxu0 0.0
        %1195 = vmatpush1.xpose.msra.mxu0 0.0
        %1196 = vmatprep.subr.mxu0 0.0
        %1197 = vmatpush1.xpose.msra.mxu0 0.0
        %1198 = vmatprep.subr.mxu0 0.0
        %1199 = vmatpush1.xpose.msra.mxu0 0.0
        %1200 = vmatprep.subr.mxu0 0.0
        %1201 = vmatpush1.xpose.msra.mxu0 0.0
        %1202 = vmatprep.subr.mxu0 0.0
        %1203 = vmatpush1.xpose.msra.mxu0 0.0
        %1204 = vmatprep.subr.mxu0 0.0
        %1205 = vmatpush1.xpose.msra.mxu0 0.0
        %1206 = vmatprep.subr.mxu0 0.0
        %1207 = vmatpush1.xpose.msra.mxu0 0.0
        %1208 = vmatprep.subr.mxu0 0.0
        %1209 = vmatpush1.xpose.msra.mxu0 0.0
        %1210 = vmatprep.subr.mxu0 0.0
        %1211 = vmatpush1.xpose.msra.mxu0 0.0
        %1212 = vmatprep.subr.mxu0 0.0
        %1213 = vmatpush1.xpose.msra.mxu0 0.0
        %1214 = vmatprep.subr.mxu0 0.0
        %1215 = vmatpush1.xpose.msra.mxu0 0.0
        %1216 = vmatprep.subr.mxu0 0.0
        %1217 = vmatpush1.xpose.msra.mxu0 0.0
        %1218 = vmatprep.subr.mxu0 0.0
        %1219 = vmatpush1.xpose.msra.mxu0 0.0
        %1220 = vmatprep.subr.mxu0 0.0
        %1221 = vmatpush1.xpose.msra.mxu0 0.0
        %1222 = vmatprep.subr.mxu0 0.0
        %1223 = vmatpush1.xpose.msra.mxu0 0.0
        %1224 = vmatprep.subr.mxu0 0.0
        %1225 = vmatpush1.xpose.msra.mxu0 0.0
        %1226 = vmatprep.subr.mxu0 0.0
        %1227 = vmatpush1.xpose.msra.mxu0 0.0
        %1228 = vmatprep.subr.mxu0 0.0
        %1229 = vmatpush1.xpose.msra.mxu0 0.0
        %1230 = vmatprep.subr.mxu0 0.0
        %1231 = vmatpush1.xpose.msra.mxu0 0.0
        %1232 = vmatprep.subr.mxu0 0.0
        %1233 = vmatpush1.xpose.msra.mxu0 0.0
        %1234 = vmatprep.subr.mxu0 0.0
        %1235 = vmatpush1.xpose.msra.mxu0 0.0
        %1236 = vmatprep.subr.mxu0 0.0
        %1237 = vmatpush1.xpose.msra.mxu0 0.0
        %1238 = vmatprep.subr.mxu0 0.0
        %1239 = vmatpush1.xpose.msra.mxu0 0.0
        %1240 = vmatprep.subr.mxu0 0.0
        %1241 = vmatpush1.xpose.msra.mxu0 0.0
        %1242 = vmatprep.subr.mxu0 0.0
        %1243 = vmatpush1.xpose.msra.mxu0 0.0
        %1244 = vmatprep.subr.mxu0 0.0
        %1245 = vmatpush1.xpose.msra.mxu0 0.0
        %1246 = vmatprep.subr.mxu0 0.0
        %1247 = vmatpush1.xpose.msra.mxu0 0.0
        %1248 = vmatprep.subr.mxu0 0.0
        %1249 = vmatpush1.xpose.msra.mxu0 0.0
        %1250 = vmatprep.subr.mxu0 0.0
        %1251 = vmatpush1.xpose.msra.mxu0 0.0
        %1252 = vmatprep.subr.mxu0 0.0
        %1253 = vmatpush1.xpose.msra.mxu0 0.0
        %1254 = vmatprep.subr.mxu0 0.0
        %1255 = vmatpush1.xpose.msra.mxu0 0.0
        %1256 = vmatprep.mubr.f32.mxu0 0.0
        %1257 = vmatmul.mubr.f32.gmra.mrb[0].mxu0 %v1188
        %v1258 = vpop.f32.mrb[0].mxu0
        %v1259 = vadd.f32 %v703, %v1258
        %v1260 = vpop.f32.mrb[0].mxu0
        %1261 = vdwg.mxu0
        %v1262 = vsel %vm708, %v1259, -inf
        %1263 = vmax.xlane.f32.xlu0 %v1262
        %v1264 = vpop.xlane.xlu0 %1263
        %v1265 = vsub.f32 %v1259, %v1264
        %v1266 = vmul.f32 %v1265, 1.442695
        %v1267 = vpow.pop %v1266
        %v1268 = vsel %vm708, %v1267, 0.0
        %1269 = vadd.xlane.f32.xlu0 %v1268
        %v1270 = vpop.xlane.xlu0 %1269
        %v1271 = vrcp.pop %v1270
        %1272 = vrot.lane.b32.xlu0 %v681, 48
        %v1273 = vpop.permute.xlu0 %1272
        %v1276 = vsel %vm708, %v1267, 0
        %1278 = vmatprep.subr.mxu0 0.0
        %1279 = vmatpush1.msra.mxu0 %v1273
        %1280 = vmatprep.subr.mxu0 0.0
        %1281 = vmatpush1.msra.mxu0 0.0
        %1282 = vmatprep.subr.mxu0 0.0
        %1283 = vmatpush1.msra.mxu0 0.0
        %1284 = vmatprep.subr.mxu0 0.0
        %1285 = vmatpush1.msra.mxu0 0.0
        %1286 = vmatprep.subr.mxu0 0.0
        %1287 = vmatpush1.msra.mxu0 0.0
        %1288 = vmatprep.subr.mxu0 0.0
        %1289 = vmatpush1.msra.mxu0 0.0
        %1290 = vmatprep.subr.mxu0 0.0
        %1291 = vmatpush1.msra.mxu0 0.0
        %1292 = vmatprep.subr.mxu0 0.0
        %1293 = vmatpush1.msra.mxu0 0.0
        %1294 = vmatprep.subr.mxu0 0.0
        %1295 = vmatpush1.msra.mxu0 0.0
        %1296 = vmatprep.subr.mxu0 0.0
        %1297 = vmatpush1.msra.mxu0 0.0
        %1298 = vmatprep.subr.mxu0 0.0
        %1299 = vmatpush1.msra.mxu0 0.0
        %1300 = vmatprep.subr.mxu0 0.0
        %1301 = vmatpush1.msra.mxu0 0.0
        %1302 = vmatprep.subr.mxu0 0.0
        %1303 = vmatpush1.msra.mxu0 0.0
        %1304 = vmatprep.subr.mxu0 0.0
        %1305 = vmatpush1.msra.mxu0 0.0
        %1306 = vmatprep.subr.mxu0 0.0
        %1307 = vmatpush1.msra.mxu0 0.0
        %1308 = vmatprep.subr.mxu0 0.0
        %1309 = vmatpush1.msra.mxu0 0.0
        %1310 = vmatprep.subr.mxu0 0.0
        %1311 = vmatpush1.msra.mxu0 0.0
        %1312 = vmatprep.subr.mxu0 0.0
        %1313 = vmatpush1.msra.mxu0 0.0
        %1314 = vmatprep.subr.mxu0 0.0
        %1315 = vmatpush1.msra.mxu0 0.0
        %1316 = vmatprep.subr.mxu0 0.0
        %1317 = vmatpush1.msra.mxu0 0.0
        %1318 = vmatprep.subr.mxu0 0.0
        %1319 = vmatpush1.msra.mxu0 0.0
        %1320 = vmatprep.subr.mxu0 0.0
        %1321 = vmatpush1.msra.mxu0 0.0
        %1322 = vmatprep.subr.mxu0 0.0
        %1323 = vmatpush1.msra.mxu0 0.0
        %1324 = vmatprep.subr.mxu0 0.0
        %1325 = vmatpush1.msra.mxu0 0.0
        %1326 = vmatprep.subr.mxu0 0.0
        %1327 = vmatpush1.msra.mxu0 0.0
        %1328 = vmatprep.subr.mxu0 0.0
        %1329 = vmatpush1.msra.mxu0 0.0
        %1330 = vmatprep.subr.mxu0 0.0
        %1331 = vmatpush1.msra.mxu0 0.0
        %1332 = vmatprep.subr.mxu0 0.0
        %1333 = vmatpush1.msra.mxu0 0.0
        %1334 = vmatprep.subr.mxu0 0.0
        %1335 = vmatpush1.msra.mxu0 0.0
        %1336 = vmatprep.subr.mxu0 0.0
        %1337 = vmatpush1.msra.mxu0 0.0
        %1338 = vmatprep.subr.mxu0 0.0
        %1339 = vmatpush1.msra.mxu0 0.0
        %1340 = vmatprep.subr.mxu0 0.0
        %1341 = vmatpush1.msra.mxu0 0.0
        %1342 = vmatprep.mubr.f32.mxu0 0.0
        %1343 = vmatmul.mubr.f32.gmra.mrb[0].mxu0 %v1276
        %v1344 = vpop.f32.mrb[0].mxu0
        %v1345 = vadd.f32 0.0, %v1344
        %v1346 = vpop.f32.mrb[0].mxu0
        %1347 = vdwg.mxu0
        %v1348 = vmul.f32 %v1345, %v1271
        %v1350 = vsel %vm708, %v1348, 0
        %1352 = vmatprep.subr.mxu0 0.0
        %1353 = vmatpush1.msra.mxu0 %v689
        %1354 = vmatprep.subr.mxu0 0.0
        %1355 = vmatpush1.msra.mxu0 0.0
        %1356 = vmatprep.subr.mxu0 0.0
        %1357 = vmatpush1.msra.mxu0 0.0
        %1358 = vmatprep.subr.mxu0 0.0
        %1359 = vmatpush1.msra.mxu0 0.0
        %1360 = vmatprep.subr.mxu0 0.0
        %1361 = vmatpush1.msra.mxu0 0.0
        %1362 = vmatprep.subr.mxu0 0.0
        %1363 = vmatpush1.msra.mxu0 0.0
        %1364 = vmatprep.subr.mxu0 0.0
        %1365 = vmatpush1.msra.mxu0 0.0
        %1366 = vmatprep.subr.mxu0 0.0
        %1367 = vmatpush1.msra.mxu0 0.0
        %1368 = vmatprep.subr.mxu0 0.0
        %1369 = vmatpush1.msra.mxu0 0.0
        %1370 = vmatprep.subr.mxu0 0.0
        %1371 = vmatpush1.msra.mxu0 0.0
        %1372 = vmatprep.subr.mxu0 0.0
        %1373 = vmatpush1.msra.mxu0 0.0
        %1374 = vmatprep.subr.mxu0 0.0
        %1375 = vmatpush1.msra.mxu0 0.0
        %1376 = vmatprep.subr.mxu0 0.0
        %1377 = vmatpush1.msra.mxu0 0.0
        %1378 = vmatprep.subr.mxu0 0.0
        %1379 = vmatpush1.msra.mxu0 0.0
        %1380 = vmatprep.subr.mxu0 0.0
        %1381 = vmatpush1.msra.mxu0 0.0
        %1382 = vmatprep.subr.mxu0 0.0
        %1383 = vmatpush1.msra.mxu0 0.0
        %1384 = vmatprep.subr.mxu0 0.0
        %1385 = vmatpush1.msra.mxu0 0.0
        %1386 = vmatprep.subr.mxu0 0.0
        %1387 = vmatpush1.msra.mxu0 0.0
        %1388 = vmatprep.subr.mxu0 0.0
        %1389 = vmatpush1.msra.mxu0 0.0
        %1390 = vmatprep.subr.mxu0 0.0
        %1391 = vmatpush1.msra.mxu0 0.0
        %1392 = vmatprep.subr.mxu0 0.0
        %1393 = vmatpush1.msra.mxu0 0.0
        %1394 = vmatprep.subr.mxu0 0.0
        %1395 = vmatpush1.msra.mxu0 0.0
        %1396 = vmatprep.subr.mxu0 0.0
        %1397 = vmatpush1.msra.mxu0 0.0
        %1398 = vmatprep.subr.mxu0 0.0
        %1399 = vmatpush1.msra.mxu0 0.0
        %1400 = vmatprep.subr.mxu0 0.0
        %1401 = vmatpush1.msra.mxu0 0.0
        %1402 = vmatprep.subr.mxu0 0.0
        %1403 = vmatpush1.msra.mxu0 0.0
        %1404 = vmatprep.subr.mxu0 0.0
        %1405 = vmatpush1.msra.mxu0 0.0
        %1406 = vmatprep.subr.mxu0 0.0
        %1407 = vmatpush1.msra.mxu0 0.0
        %1408 = vmatprep.subr.mxu0 0.0
        %1409 = vmatpush1.msra.mxu0 0.0
        %1410 = vmatprep.subr.mxu0 0.0
        %1411 = vmatpush1.msra.mxu0 0.0
        %1412 = vmatprep.subr.mxu0 0.0
        %1413 = vmatpush1.msra.mxu0 0.0
        %1414 = vmatprep.subr.mxu0 0.0
        %1415 = vmatpush1.msra.mxu0 0.0
        %1416 = vmatprep.mubr.f32.mxu0 0.0
        %1417 = vmatmul.mubr.f32.gmra.mrb[0].mxu0 %v1350
        %v1418 = vpop.f32.mrb[0].mxu0
        %v1419 = vadd.f32 0.0, %v1418
        %v1420 = vpop.f32.mrb[0].mxu0
        %1421 = vdwg.mxu0
        %v1422 = vadd.f32 %v1183, %v1419
        %1423 = vrot.lane.b32.xlu0 %v684, 104
        %v1424 = vpop.permute.xlu0 %1423
        %1425 = vrot.lane.b32.xlu0 %v681, 72
        %v1426 = vpop.permute.xlu0 %1425
        %v1427 = vsel %vm708, %v1424, 0
        %v1429 = vsel %vm708, %v1426, 0
        %1431 = vmatprep.subr.mxu0 0.0
        %1432 = vmatpush1.xpose.msra.mxu0 %v1429
        %1433 = vmatprep.subr.mxu0 0.0
        %1434 = vmatpush1.xpose.msra.mxu0 0.0
        %1435 = vmatprep.subr.mxu0 0.0
        %1436 = vmatpush1.xpose.msra.mxu0 0.0
        %1437 = vmatprep.subr.mxu0 0.0
        %1438 = vmatpush1.xpose.msra.mxu0 0.0
        %1439 = vmatprep.subr.mxu0 0.0
        %1440 = vmatpush1.xpose.msra.mxu0 0.0
        %1441 = vmatprep.subr.mxu0 0.0
        %1442 = vmatpush1.xpose.msra.mxu0 0.0
        %1443 = vmatprep.subr.mxu0 0.0
        %1444 = vmatpush1.xpose.msra.mxu0 0.0
        %1445 = vmatprep.subr.mxu0 0.0
        %1446 = vmatpush1.xpose.msra.mxu0 0.0
        %1447 = vmatprep.subr.mxu0 0.0
        %1448 = vmatpush1.xpose.msra.mxu0 0.0
        %1449 = vmatprep.subr.mxu0 0.0
        %1450 = vmatpush1.xpose.msra.mxu0 0.0
        %1451 = vmatprep.subr.mxu0 0.0
        %1452 = vmatpush1.xpose.msra.mxu0 0.0
        %1453 = vmatprep.subr.mxu0 0.0
        %1454 = vmatpush1.xpose.msra.mxu0 0.0
        %1455 = vmatprep.subr.mxu0 0.0
        %1456 = vmatpush1.xpose.msra.mxu0 0.0
        %1457 = vmatprep.subr.mxu0 0.0
        %1458 = vmatpush1.xpose.msra.mxu0 0.0
        %1459 = vmatprep.subr.mxu0 0.0
        %1460 = vmatpush1.xpose.msra.mxu0 0.0
        %1461 = vmatprep.subr.mxu0 0.0
        %1462 = vmatpush1.xpose.msra.mxu0 0.0
        %1463 = vmatprep.subr.mxu0 0.0
        %1464 = vmatpush1.xpose.msra.mxu0 0.0
        %1465 = vmatprep.subr.mxu0 0.0
        %1466 = vmatpush1.xpose.msra.mxu0 0.0
        %1467 = vmatprep.subr.mxu0 0.0
        %1468 = vmatpush1.xpose.msra.mxu0 0.0
        %1469 = vmatprep.subr.mxu0 0.0
        %1470 = vmatpush1.xpose.msra.mxu0 0.0
        %1471 = vmatprep.subr.mxu0 0.0
        %1472 = vmatpush1.xpose.msra.mxu0 0.0
        %1473 = vmatprep.subr.mxu0 0.0
        %1474 = vmatpush1.xpose.msra.mxu0 0.0
        %1475 = vmatprep.subr.mxu0 0.0
        %1476 = vmatpush1.xpose.msra.mxu0 0.0
        %1477 = vmatprep.subr.mxu0 0.0
        %1478 = vmatpush1.xpose.msra.mxu0 0.0
        %1479 = vmatprep.subr.mxu0 0.0
        %1480 = vmatpush1.xpose.msra.mxu0 0.0
        %1481 = vmatprep.subr.mxu0 0.0
        %1482 = vmatpush1.xpose.msra.mxu0 0.0
        %1483 = vmatprep.subr.mxu0 0.0
        %1484 = vmatpush1.xpose.msra.mxu0 0.0
        %1485 = vmatprep.subr.mxu0 0.0
        %1486 = vmatpush1.xpose.msra.mxu0 0.0
        %1487 = vmatprep.subr.mxu0 0.0
        %1488 = vmatpush1.xpose.msra.mxu0 0.0
        %1489 = vmatprep.subr.mxu0 0.0
        %1490 = vmatpush1.xpose.msra.mxu0 0.0
        %1491 = vmatprep.subr.mxu0 0.0
        %1492 = vmatpush1.xpose.msra.mxu0 0.0
        %1493 = vmatprep.subr.mxu0 0.0
        %1494 = vmatpush1.xpose.msra.mxu0 0.0
        %1495 = vmatprep.mubr.f32.mxu0 0.0
        %1496 = vmatmul.mubr.f32.gmra.mrb[0].mxu0 %v1427
        %v1497 = vpop.f32.mrb[0].mxu0
        %v1498 = vadd.f32 %v703, %v1497
        %v1499 = vpop.f32.mrb[0].mxu0
        %1500 = vdwg.mxu0
        %v1501 = vsel %vm708, %v1498, -inf
        %1502 = vmax.xlane.f32.xlu0 %v1501
        %v1503 = vpop.xlane.xlu0 %1502
        %v1504 = vsub.f32 %v1498, %v1503
        %v1505 = vmul.f32 %v1504, 1.442695
        %v1506 = vpow.pop %v1505
        %v1507 = vsel %vm708, %v1506, 0.0
        %1508 = vadd.xlane.f32.xlu0 %v1507
        %v1509 = vpop.xlane.xlu0 %1508
        %v1510 = vrcp.pop %v1509
        %1511 = vrot.lane.b32.xlu0 %v681, 40
        %v1512 = vpop.permute.xlu0 %1511
        %v1515 = vsel %vm708, %v1506, 0
        %1517 = vmatprep.subr.mxu0 0.0
        %1518 = vmatpush1.msra.mxu0 %v1512
        %1519 = vmatprep.subr.mxu0 0.0
        %1520 = vmatpush1.msra.mxu0 0.0
        %1521 = vmatprep.subr.mxu0 0.0
        %1522 = vmatpush1.msra.mxu0 0.0
        %1523 = vmatprep.subr.mxu0 0.0
        %1524 = vmatpush1.msra.mxu0 0.0
        %1525 = vmatprep.subr.mxu0 0.0
        %1526 = vmatpush1.msra.mxu0 0.0
        %1527 = vmatprep.subr.mxu0 0.0
        %1528 = vmatpush1.msra.mxu0 0.0
        %1529 = vmatprep.subr.mxu0 0.0
        %1530 = vmatpush1.msra.mxu0 0.0
        %1531 = vmatprep.subr.mxu0 0.0
        %1532 = vmatpush1.msra.mxu0 0.0
        %1533 = vmatprep.subr.mxu0 0.0
        %1534 = vmatpush1.msra.mxu0 0.0
        %1535 = vmatprep.subr.mxu0 0.0
        %1536 = vmatpush1.msra.mxu0 0.0
        %1537 = vmatprep.subr.mxu0 0.0
        %1538 = vmatpush1.msra.mxu0 0.0
        %1539 = vmatprep.subr.mxu0 0.0
        %1540 = vmatpush1.msra.mxu0 0.0
        %1541 = vmatprep.subr.mxu0 0.0
        %1542 = vmatpush1.msra.mxu0 0.0
        %1543 = vmatprep.subr.mxu0 0.0
        %1544 = vmatpush1.msra.mxu0 0.0
        %1545 = vmatprep.subr.mxu0 0.0
        %1546 = vmatpush1.msra.mxu0 0.0
        %1547 = vmatprep.subr.mxu0 0.0
        %1548 = vmatpush1.msra.mxu0 0.0
        %1549 = vmatprep.subr.mxu0 0.0
        %1550 = vmatpush1.msra.mxu0 0.0
        %1551 = vmatprep.subr.mxu0 0.0
        %1552 = vmatpush1.msra.mxu0 0.0
        %1553 = vmatprep.subr.mxu0 0.0
        %1554 = vmatpush1.msra.mxu0 0.0
        %1555 = vmatprep.subr.mxu0 0.0
        %1556 = vmatpush1.msra.mxu0 0.0
        %1557 = vmatprep.subr.mxu0 0.0
        %1558 = vmatpush1.msra.mxu0 0.0
        %1559 = vmatprep.subr.mxu0 0.0
        %1560 = vmatpush1.msra.mxu0 0.0
        %1561 = vmatprep.subr.mxu0 0.0
        %1562 = vmatpush1.msra.mxu0 0.0
        %1563 = vmatprep.subr.mxu0 0.0
        %1564 = vmatpush1.msra.mxu0 0.0
        %1565 = vmatprep.subr.mxu0 0.0
        %1566 = vmatpush1.msra.mxu0 0.0
        %1567 = vmatprep.subr.mxu0 0.0
        %1568 = vmatpush1.msra.mxu0 0.0
        %1569 = vmatprep.subr.mxu0 0.0
        %1570 = vmatpush1.msra.mxu0 0.0
        %1571 = vmatprep.subr.mxu0 0.0
        %1572 = vmatpush1.msra.mxu0 0.0
        %1573 = vmatprep.subr.mxu0 0.0
        %1574 = vmatpush1.msra.mxu0 0.0
        %1575 = vmatprep.subr.mxu0 0.0
        %1576 = vmatpush1.msra.mxu0 0.0
        %1577 = vmatprep.subr.mxu0 0.0
        %1578 = vmatpush1.msra.mxu0 0.0
        %1579 = vmatprep.subr.mxu0 0.0
        %1580 = vmatpush1.msra.mxu0 0.0
        %1581 = vmatprep.mubr.f32.mxu0 0.0
        %1582 = vmatmul.mubr.f32.gmra.mrb[0].mxu0 %v1515
        %v1583 = vpop.f32.mrb[0].mxu0
        %v1584 = vadd.f32 0.0, %v1583
        %v1585 = vpop.f32.mrb[0].mxu0
        %1586 = vdwg.mxu0
        %v1587 = vmul.f32 %v1584, %v1510
        %v1589 = vsel %vm708, %v1587, 0
        %1591 = vmatprep.subr.mxu0 0.0
        %1592 = vmatpush1.msra.mxu0 %v690
        %1593 = vmatprep.subr.mxu0 0.0
        %1594 = vmatpush1.msra.mxu0 0.0
        %1595 = vmatprep.subr.mxu0 0.0
        %1596 = vmatpush1.msra.mxu0 0.0
        %1597 = vmatprep.subr.mxu0 0.0
        %1598 = vmatpush1.msra.mxu0 0.0
        %1599 = vmatprep.subr.mxu0 0.0
        %1600 = vmatpush1.msra.mxu0 0.0
        %1601 = vmatprep.subr.mxu0 0.0
        %1602 = vmatpush1.msra.mxu0 0.0
        %1603 = vmatprep.subr.mxu0 0.0
        %1604 = vmatpush1.msra.mxu0 0.0
        %1605 = vmatprep.subr.mxu0 0.0
        %1606 = vmatpush1.msra.mxu0 0.0
        %1607 = vmatprep.subr.mxu0 0.0
        %1608 = vmatpush1.msra.mxu0 0.0
        %1609 = vmatprep.subr.mxu0 0.0
        %1610 = vmatpush1.msra.mxu0 0.0
        %1611 = vmatprep.subr.mxu0 0.0
        %1612 = vmatpush1.msra.mxu0 0.0
        %1613 = vmatprep.subr.mxu0 0.0
        %1614 = vmatpush1.msra.mxu0 0.0
        %1615 = vmatprep.subr.mxu0 0.0
        %1616 = vmatpush1.msra.mxu0 0.0
        %1617 = vmatprep.subr.mxu0 0.0
        %1618 = vmatpush1.msra.mxu0 0.0
        %1619 = vmatprep.subr.mxu0 0.0
        %1620 = vmatpush1.msra.mxu0 0.0
        %1621 = vmatprep.subr.mxu0 0.0
        %1622 = vmatpush1.msra.mxu0 0.0
        %1623 = vmatprep.subr.mxu0 0.0
        %1624 = vmatpush1.msra.mxu0 0.0
        %1625 = vmatprep.subr.mxu0 0.0
        %1626 = vmatpush1.msra.mxu0 0.0
        %1627 = vmatprep.subr.mxu0 0.0
        %1628 = vmatpush1.msra.mxu0 0.0
        %1629 = vmatprep.subr.mxu0 0.0
        %1630 = vmatpush1.msra.mxu0 0.0
        %1631 = vmatprep.subr.mxu0 0.0
        %1632 = vmatpush1.msra.mxu0 0.0
        %1633 = vmatprep.subr.mxu0 0.0
        %1634 = vmatpush1.msra.mxu0 0.0
        %1635 = vmatprep.subr.mxu0 0.0
        %1636 = vmatpush1.msra.mxu0 0.0
        %1637 = vmatprep.subr.mxu0 0.0
        %1638 = vmatpush1.msra.mxu0 0.0
        %1639 = vmatprep.subr.mxu0 0.0
        %1640 = vmatpush1.msra.mxu0 0.0
        %1641 = vmatprep.subr.mxu0 0.0
        %1642 = vmatpush1.msra.mxu0 0.0
        %1643 = vmatprep.subr.mxu0 0.0
        %1644 = vmatpush1.msra.mxu0 0.0
        %1645 = vmatprep.subr.mxu0 0.0
        %1646 = vmatpush1.msra.mxu0 0.0
        %1647 = vmatprep.subr.mxu0 0.0
        %1648 = vmatpush1.msra.mxu0 0.0
        %1649 = vmatprep.subr.mxu0 0.0
        %1650 = vmatpush1.msra.mxu0 0.0
        %1651 = vmatprep.subr.mxu0 0.0
        %1652 = vmatpush1.msra.mxu0 0.0
        %1653 = vmatprep.subr.mxu0 0.0
        %1654 = vmatpush1.msra.mxu0 0.0
        %1655 = vmatprep.mubr.f32.mxu0 0.0
        %1656 = vmatmul.mubr.f32.gmra.mrb[0].mxu0 %v1589
        %v1657 = vpop.f32.mrb[0].mxu0
        %v1658 = vadd.f32 0.0, %v1657
        %v1659 = vpop.f32.mrb[0].mxu0
        %1660 = vdwg.mxu0
        %v1661 = vadd.f32 %v1422, %v1658
        %v1662 = vld [vmem:[%s10] sm:$0x1]
        %v1664 = vlaneseq
        %v1665 = vshrl.u32 %v1664, 7
        %v1666 = vsub.s32 0, %v1665
        %v1667 = vrot.slane %v1662, %v1666
        %v1669 = vmul.f32 %v1661, %v1667
        %v1670 = vld [vmem:[%s11] sm:$0x1]
        %v1672 = vlaneseq
        %v1673 = vshrl.u32 %v1672, 7
        %v1674 = vsub.s32 0, %v1673
        %v1675 = vrot.slane %v1670, %v1674
        %v1677 = vadd.f32 %v1669, %v1675
        %v1678 = vsel %vm571, %v1677, 0.0
        %1679 = vadd.xlane.f32.xlu0 %v1678
        %v1680 = vpop.xlane.xlu0 %1679
        %v1681 = vmul.f32 %v1680, %v575
        %v1682 = vsub.f32 %v1677, %v1681
        %v1683 = vmul.f32 %v1682, %v1682
        %v1684 = vsel %vm571, %v1683, 0.0
        %1685 = vadd.xlane.f32.xlu0 %v1684
        %v1686 = vpop.xlane.xlu0 %1685
        %v1687 = vmul.f32 %v1686, %v575
        %v1688 = vadd.f32 %v1687, 1e-05
        %v1689 = vrsqrt.pop %v1688
        %v1690 = vmul.f32 %v1682, %v1689
        %v1691 = vmul.f32 %v1690, %v590
        %v1692 = vadd.f32 %v1691, %v597
        %v1693 = vld [vmem:[%s12] sm:$0xff]
        %v1694 = vld [vmem:[%s12 + $0x8] sm:$0xff]
        %v1695 = vld [vmem:[%s12 + $0x10] sm:$0xff]
        %v1696 = vld [vmem:[%s12 + $0x18] sm:$0xff]
        %v1697 = vld [vmem:[%s13] sm:$0x1]
        %v1699 = vlaneseq
        %v1700 = vshrl.u32 %v1699, 7
        %v1701 = vsub.s32 0, %v1700
        %v1702 = vrot.slane %v1697, %v1701
        %v1705 = vsel %vm571, %v1692, 0
        %1707 = vmatprep.subr.mxu0 0.0
        %1708 = vmatpush1.msra.mxu0 %v1693
        %1709 = vmatprep.subr.mxu0 0.0
        %1710 = vmatpush1.msra.mxu0 %v1694
        %1711 = vmatprep.subr.mxu0 0.0
        %1712 = vmatpush1.msra.mxu0 %v1695
        %1713 = vmatprep.subr.mxu0 0.0
        %1714 = vmatpush1.msra.mxu0 %v1696
        %1715 = vmatprep.subr.mxu0 0.0
        %1716 = vmatpush1.msra.mxu0 0.0
        %1717 = vmatprep.subr.mxu0 0.0
        %1718 = vmatpush1.msra.mxu0 0.0
        %1719 = vmatprep.subr.mxu0 0.0
        %1720 = vmatpush1.msra.mxu0 0.0
        %1721 = vmatprep.subr.mxu0 0.0
        %1722 = vmatpush1.msra.mxu0 0.0
        %1723 = vmatprep.subr.mxu0 0.0
        %1724 = vmatpush1.msra.mxu0 0.0
        %1725 = vmatprep.subr.mxu0 0.0
        %1726 = vmatpush1.msra.mxu0 0.0
        %1727 = vmatprep.subr.mxu0 0.0
        %1728 = vmatpush1.msra.mxu0 0.0
        %1729 = vmatprep.subr.mxu0 0.0
        %1730 = vmatpush1.msra.mxu0 0.0
        %1731 = vmatprep.subr.mxu0 0.0
        %1732 = vmatpush1.msra.mxu0 0.0
        %1733 = vmatprep.subr.mxu0 0.0
        %1734 = vmatpush1.msra.mxu0 0.0
        %1735 = vmatprep.subr.mxu0 0.0
        %1736 = vmatpush1.msra.mxu0 0.0
        %1737 = vmatprep.subr.mxu0 0.0
        %1738 = vmatpush1.msra.mxu0 0.0
        %1739 = vmatprep.subr.mxu0 0.0
        %1740 = vmatpush1.msra.mxu0 0.0
        %1741 = vmatprep.subr.mxu0 0.0
        %1742 = vmatpush1.msra.mxu0 0.0
        %1743 = vmatprep.subr.mxu0 0.0
        %1744 = vmatpush1.msra.mxu0 0.0
        %1745 = vmatprep.subr.mxu0 0.0
        %1746 = vmatpush1.msra.mxu0 0.0
        %1747 = vmatprep.subr.mxu0 0.0
        %1748 = vmatpush1.msra.mxu0 0.0
        %1749 = vmatprep.subr.mxu0 0.0
        %1750 = vmatpush1.msra.mxu0 0.0
        %1751 = vmatprep.subr.mxu0 0.0
        %1752 = vmatpush1.msra.mxu0 0.0
        %1753 = vmatprep.subr.mxu0 0.0
        %1754 = vmatpush1.msra.mxu0 0.0
        %1755 = vmatprep.subr.mxu0 0.0
        %1756 = vmatpush1.msra.mxu0 0.0
        %1757 = vmatprep.subr.mxu0 0.0
        %1758 = vmatpush1.msra.mxu0 0.0
        %1759 = vmatprep.subr.mxu0 0.0
        %1760 = vmatpush1.msra.mxu0 0.0
        %1761 = vmatprep.subr.mxu0 0.0
        %1762 = vmatpush1.msra.mxu0 0.0
        %1763 = vmatprep.subr.mxu0 0.0
        %1764 = vmatpush1.msra.mxu0 0.0
        %1765 = vmatprep.subr.mxu0 0.0
        %1766 = vmatpush1.msra.mxu0 0.0
        %1767 = vmatprep.subr.mxu0 0.0
        %1768 = vmatpush1.msra.mxu0 0.0
        %1769 = vmatprep.subr.mxu0 0.0
        %1770 = vmatpush1.msra.mxu0 0.0
        %1771 = vmatprep.mubr.f32.mxu0 0.0
        %1772 = vmatmul.mubr.f32.gmra.mrb[0].mxu0 %v1705
        %v1773 = vpop.f32.mrb[0].mxu0
        %v1774 = vadd.f32 %v1702, %v1773
        %v1775 = vpop.f32.mrb[0].mxu0
        %1776 = vdwg.mxu0
        %v1777 = vmax.f32 %v1774, 0.0
        %v1778 = vld [vmem:[%s14] sm:$0xff]
        %v1779 = vld [vmem:[%s14 + $0x8] sm:$0xff]
        %v1780 = vld [vmem:[%s14 + $0x10] sm:$0xff]
        %v1781 = vld [vmem:[%s14 + $0x18] sm:$0xff]
        %v1782 = vld [vmem:[%s14 + $0x20] sm:$0xff]
        %v1783 = vld [vmem:[%s14 + $0x28] sm:$0xff]
        %v1784 = vld [vmem:[%s14 + $0x30] sm:$0xff]
        %v1785 = vld [vmem:[%s14 + $0x38] sm:$0xff]
        %v1786 = vld [vmem:[%s15] sm:$0x1]
        %v1788 = vlaneseq
        %v1789 = vshrl.u32 %v1788, 7
        %v1790 = vsub.s32 0, %v1789
        %v1791 = vrot.slane %v1786, %v1790
        %vm1793 = vcmask 523264
        %v1795 = vsel %vm1793, %v1777, 0
        %1797 = vmatprep.subr.mxu0 0.0
        %1798 = vmatpush1.msra.mxu0 %v1778
        %1799 = vmatprep.subr.mxu0 0.0
        %1800 = vmatpush1.msra.mxu0 %v1779
        %1801 = vmatprep.subr.mxu0 0.0
        %1802 = vmatpush1.msra.mxu0 %v1780
        %1803 = vmatprep.subr.mxu0 0.0
        %1804 = vmatpush1.msra.mxu0 %v1781
        %1805 = vmatprep.subr.mxu0 0.0
        %1806 = vmatpush1.msra.mxu0 %v1782
        %1807 = vmatprep.subr.mxu0 0.0
        %1808 = vmatpush1.msra.mxu0 %v1783
        %1809 = vmatprep.subr.mxu0 0.0
        %1810 = vmatpush1.msra.mxu0 %v1784
        %1811 = vmatprep.subr.mxu0 0.0
        %1812 = vmatpush1.msra.mxu0 %v1785
        %1813 = vmatprep.subr.mxu0 0.0
        %1814 = vmatpush1.msra.mxu0 0.0
        %1815 = vmatprep.subr.mxu0 0.0
        %1816 = vmatpush1.msra.mxu0 0.0
        %1817 = vmatprep.subr.mxu0 0.0
        %1818 = vmatpush1.msra.mxu0 0.0
        %1819 = vmatprep.subr.mxu0 0.0
        %1820 = vmatpush1.msra.mxu0 0.0
        %1821 = vmatprep.subr.mxu0 0.0
        %1822 = vmatpush1.msra.mxu0 0.0
        %1823 = vmatprep.subr.mxu0 0.0
        %1824 = vmatpush1.msra.mxu0 0.0
        %1825 = vmatprep.subr.mxu0 0.0
        %1826 = vmatpush1.msra.mxu0 0.0
        %1827 = vmatprep.subr.mxu0 0.0
        %1828 = vmatpush1.msra.mxu0 0.0
        %1829 = vmatprep.subr.mxu0 0.0
        %1830 = vmatpush1.msra.mxu0 0.0
        %1831 = vmatprep.subr.mxu0 0.0
        %1832 = vmatpush1.msra.mxu0 0.0
        %1833 = vmatprep.subr.mxu0 0.0
        %1834 = vmatpush1.msra.mxu0 0.0
        %1835 = vmatprep.subr.mxu0 0.0
        %1836 = vmatpush1.msra.mxu0 0.0
        %1837 = vmatprep.subr.mxu0 0.0
        %1838 = vmatpush1.msra.mxu0 0.0
        %1839 = vmatprep.subr.mxu0 0.0
        %1840 = vmatpush1.msra.mxu0 0.0
        %1841 = vmatprep.subr.mxu0 0.0
        %1842 = vmatpush1.msra.mxu0 0.0
        %1843 = vmatprep.subr.mxu0 0.0
        %1844 = vmatpush1.msra.mxu0 0.0
        %1845 = vmatprep.subr.mxu0 0.0
        %1846 = vmatpush1.msra.mxu0 0.0
        %1847 = vmatprep.subr.mxu0 0.0
        %1848 = vmatpush1.msra.mxu0 0.0
        %1849 = vmatprep.subr.mxu0 0.0
        %1850 = vmatpush1.msra.mxu0 0.0
        %1851 = vmatprep.subr.mxu0 0.0
        %1852 = vmatpush1.msra.mxu0 0.0
        %1853 = vmatprep.subr.mxu0 0.0
        %1854 = vmatpush1.msra.mxu0 0.0
        %1855 = vmatprep.subr.mxu0 0.0
        %1856 = vmatpush1.msra.mxu0 0.0
        %1857 = vmatprep.subr.mxu0 0.0
        %1858 = vmatpush1.msra.mxu0 0.0
        %1859 = vmatprep.subr.mxu0 0.0
        %1860 = vmatpush1.msra.mxu0 0.0
        %1861 = vmatprep.mubr.f32.mxu0 0.0
        %1862 = vmatmul.mubr.f32.gmra.mrb[0].mxu0 %v1795
        %v1863 = vpop.f32.mrb[0].mxu0
        %v1864 = vadd.f32 %v1791, %v1863
        %v1865 = vpop.f32.mrb[0].mxu0
        %1866 = vdwg.mxu0
        %v1867 = vadd.f32 %v1661, %v1864
        %1868 = vst.msk [vmem:[%s547] sm:$0xff] %vm571, %v1867
        %s1869 = sand.u32 %s387, 1
        %s1870 = scalar_lea.sflag [#allocation4], %s1869
        %s1871 = sand.u32 %s387, 1
        %s1872 = smul.addr %s1871, 8
        %s1873 = scalar_lea.vmem [#allocation5], %s1872
        // Predicated region
        $region89: #{tpu_custom_call.1} parent=83 // pred_check
          %p1874 = pneg %p397
        $region90: #{tpu_custom_call.1} parent=83 // pred_check_branch
          %1876 = sbr.rel (%p1874) target = $region92
        $region91: #{tpu_custom_call.1} parent=83 // pred_region
          %s1878 = ssub.s32 128, 128
          %1879 = vsyncadd %s1870, %s1878
          %s1880 = smul.addr %s33, 128
          %s1881 = scalar_lea.hbm %s16, %s1880
          %s1883 = sshll.u32 %s1873, 4
          %s1884 = int_to_ptr.vmem [resolvable:$true] %s1883
          %1886 = dma.vmem_to_hbm [thread:$0]  %s1884, 128, %s1881, %s1870
        $region92: #{tpu_custom_call.1} parent=83 // pred_fallthru
          _
      $region84: #{tpu_custom_call.1} parent=5 // pred_fallthru
        _
      %p1887 = scmp.le.s32.totalorder 2, %s28
      // Predicated region
      $region93: #{tpu_custom_call.1} parent=5 // pred_check
        %p1888 = pneg %p1887
      $region94: #{tpu_custom_call.1} parent=5 // pred_check_branch
        %1890 = sbr.rel (%p1888) target = $region96
      $region95: #{tpu_custom_call.1} parent=5 // pred_region
        %s1891 = ssub.s32 %s28, 2
        // Predicated region
        $region97: #{tpu_custom_call.1} parent=95 // pred_check
          %p1892 = pneg %p403
        $region98: #{tpu_custom_call.1} parent=95 // pred_check_branch
          %1894 = sbr.rel (%p1892) target = $region100
        $region99: #{tpu_custom_call.1} parent=95 // pred_region
          %s1895 = sand.u32 %s388, 1
          %s1896 = scalar_lea.sflag [#allocation4], %s1895
          %s1897 = sand.u32 %s388, 1
          %s1898 = smul.addr %s1897, 8
          %s1899 = scalar_lea.vmem [#allocation5], %s1898
          %1900 = dma.done %s1896, 128
        $region100: #{tpu_custom_call.1} parent=95 // pred_fallthru
          _
      $region96: #{tpu_custom_call.1} parent=5 // pred_fallthru
        _
    $region6: #{tpu_custom_call.1} parent=1 // loop_footer
      %s32 = sadd.s32 1, %s28
    $region7: #{tpu_custom_call.1} parent=1 // loop_footer_branch
      %27 = sbr.rel target = $region3
    $region8: #{tpu_custom_call.1} parent=1 // loop_exit
      _
    %1901 = vsyncpa [#allocation3], 1
    %s1902 = scalar_lea.sflag [#allocation3], 1
    %1903 = vsyncpa %s1902, 1
    %1904 = vsyncpa [#allocation4], 1
    %s1905 = scalar_lea.sflag [#allocation4], 1
    %1906 = vsyncpa %s1905, 1

</llo_original>
